<compile_context>
chip_gen: v7x
topology: tpu7x:2x2x1
jax: 0.10.0
libtpu: 0.0.40
codegen_flags: <defaults>
</compile_context>

<pallas_src>
import jax
import jax.numpy as jnp
from jax.experimental import pallas as pl
from jax.experimental.pallas import tpu as pltpu

C_IN, C1, C2, C3 = 3, 128, 256, 512
BN_EPS = 1e-5
# Per-step matmul M = BB*TN; bounds f32 intermediates to ~M*(128+256+512)*4B
# (<8 MiB at M=2048), comfortably inside scoped VMEM on v5e/v6e/v7x.
MAX_M = 2048


def point_center_kernel(x_ref,
                        w1_ref, b1_ref,
                        w2_ref, b2_ref,
                        w3_ref,
                        o_ref):
    nc = pl.program_id(1)

    # Running per-group max lives in the (resident) output block.
    @pl.when(nc == 0)
    def _init():
        o_ref[...] = jnp.full_like(o_ref, -jnp.inf)

    bb, tn, _ = x_ref.shape
    x = x_ref[...].reshape(bb * tn, C_IN)               # (M, 3) f32

    # layer 1: K=3 contraction as 3 VPU broadcast FMAs (BN folded into w1/b1).
    w1 = w1_ref[...]                                     # (3, 128)
    h1 = (x[:, 0:1] * w1[0:1, :]
          + x[:, 1:2] * w1[1:2, :]
          + x[:, 2:3] * w1[2:3, :]) + b1_ref[...]
    h1 = jnp.maximum(h1, 0.0)                            # (M, 128) f32

    # layer 2: bf16 MXU operands, f32 accumulate, f32 bias/relu.
    h2 = jnp.dot(h1.astype(jnp.bfloat16), w2_ref[...],
                 preferred_element_type=jnp.float32) + b2_ref[...]
    h2 = jnp.maximum(h2, 0.0)                            # (M, 256) f32

    # layer 3: NO bias here — max(h3 + b3) == max(h3) + b3 (b3 is per-channel),
    # so b3 is added once in the wrapper. Saves M*512 VALU adds + stores.
    h3 = jnp.dot(h2.astype(jnp.bfloat16), w3_ref[...],
                 preferred_element_type=jnp.float32)     # (M, 512)

    # per-group max over this chunk of points, merged into the running max.
    chunk_max = jnp.max(h3.reshape(bb, tn, C3), axis=1)  # (bb, 512)
    o_ref[...] = jnp.maximum(o_ref[...], chunk_max[None, :, :])


def _round_up(x, m):
    return ((x + m - 1) // m) * m


def _pick_tiles(B, N, max_m=MAX_M):
    """Pick (bb, tn, n_pad, nsplit).

    tn      : point-chunk size, always a multiple of 128 (sublane/MXU aligned).
    bb      : batch-group size, divisor of B, bb*tn <= max_m, and capped so the
              parallel grid axis has >= 2 steps when B >= 2 (v7x megacore).
    n_pad   : padded point count (multiple of nsplit*tn).
    nsplit  : number of point-axis splits on the parallel axis (only used when
              the batch axis cannot supply >= 2 parallel steps).
    """
    tn = min(max_m, _round_up(N, 128))
    bb_cap = max(1, max_m // tn)
    if B >= 2:
        bb_cap = min(bb_cap, max(1, B // 2))   # keep >=2 parallel steps (v7x)
    bb = max(d for d in range(1, bb_cap + 1) if B % d == 0)

    if B // bb >= 2 or _round_up(N, tn) <= tn:
        nsplit = 1
    else:
        nsplit = 2                              # B==1 with many points: split N
    n_pad = _round_up(N, nsplit * tn)
    return bb, tn, n_pad, nsplit


def point_center_forward(x_ncw, params):
    """x_ncw: (B, 3, N) float32, matching the PyTorch NCW convention."""
    B, cin, N = x_ncw.shape
    assert cin == C_IN

    w1, b1, w2, b2, w3, b3 = params
    w2 = w2.astype(jnp.bfloat16)   # MXU operands only; accumulation stays f32
    w3 = w3.astype(jnp.bfloat16)

    # Channels-last so channels map to lanes; layer 1 consumes the 3-wide lane
    # dim directly on the VPU (host transpose cost is negligible vs compute).
    x = jnp.transpose(x_ncw, (0, 2, 1)).astype(jnp.float32)   # (B, N, 3)

    bb, tn, n_pad, nsplit = _pick_tiles(B, N)
    if n_pad != N:
        # Pad the point axis with DUPLICATED real points (idempotent under max).
        idx = jnp.arange(n_pad) % N
        x = jnp.take(x, idx, axis=1)                          # (B, n_pad, 3)

    nb = B // bb
    total_chunks = n_pad // tn
    chunks_per_split = total_chunks // nsplit
    G = nb * nsplit                    # parallel-axis extent (>=2 when possible)

    def const_spec(shape):
        return pl.BlockSpec(shape, lambda g, nc: tuple(0 for _ in shape))

    if nsplit == 1:
        x_index_map = lambda g, nc: (g, nc, 0)
    else:
        x_index_map = lambda g, nc: (g // nsplit,
                                     (g % nsplit) * chunks_per_split + nc, 0)

    out = pl.pallas_call(
        point_center_kernel,
        out_shape=jax.ShapeDtypeStruct((G, bb, C3), jnp.float32),
        grid_spec=pltpu.PrefetchScalarGridSpec(
            num_scalar_prefetch=0,
            grid=(G, chunks_per_split),          # reduction (point) axis last
            in_specs=[
                pl.BlockSpec((bb, tn, C_IN), x_index_map),    # x
                const_spec((C_IN, C1)), const_spec((1, C1)),
                const_spec((C1, C2)),   const_spec((1, C2)),
                const_spec((C2, C3)),
            ],
            out_specs=pl.BlockSpec((1, bb, C3), lambda g, nc: (g, 0, 0)),
        ),
        compiler_params=pltpu.CompilerParams(
            dimension_semantics=("parallel", "arbitrary"),
            vmem_limit_bytes=32 * 1024 * 1024),
    )(x, w1, b1, w2, b2, w3)

    # Combine point-splits (v7x two-core path), then apply the hoisted b3.
    out = out.reshape(nb, nsplit, bb, C3)
    out = jnp.max(out, axis=1).reshape(B, C3)
    out = out + b3                                # (1, C3) bias, past the max
    return out[:, :, None]                        # torch shape (B, 512, 1)


def init_params(key):
    """Deterministic synthetic parameters matching Point_center.__init__ shapes.

    Conv1d(cin, cout, 1): weight (cout, cin, 1), bias (cout,)
    BatchNorm1d(c): gamma, beta, running_mean, running_var
    Eval-mode BN is folded INTO the weights and bias:
        scale = gamma / sqrt(var + eps)
        w_eff = w.T * scale            (cin, cout)
        b_eff = b_conv*scale + beta - mean*scale
    so the kernel only does dot + bias (+relu).
    """
    keys = jax.random.split(key, 12)
    dims = [(C_IN, C1), (C1, C2), (C2, C3)]
    layers = []
    for i, (cin, cout) in enumerate(dims):
        kw, kb, kg, kbe = keys[4 * i:4 * i + 4]
        w = jax.random.normal(kw, (cout, cin), jnp.float32) * 0.05
        b_conv = jax.random.normal(kb, (cout,), jnp.float32) * 0.05
        gamma = 1.0 + 0.1 * jax.random.normal(kg, (cout,), jnp.float32)
        beta = 0.1 * jax.random.normal(kbe, (cout,), jnp.float32)
        run_mean = jnp.zeros((cout,), jnp.float32)
        run_var = jnp.ones((cout,), jnp.float32)
        # TODO(synk): training-mode BatchNorm (batch statistics) not modeled;
        # eval-mode running-stat BN is folded into the weights/bias instead.
        scale = gamma / jnp.sqrt(run_var + BN_EPS)
        shift = beta - run_mean * scale
        w_eff = jnp.transpose(w) * scale[None, :]          # (cin, cout)
        b_eff = (b_conv * scale + shift).reshape(1, cout)  # (1, cout)
        layers.append((w_eff, b_eff))
    (w1, b1), (w2, b2), (w3, b3) = layers
    return (w1, b1, w2, b2, w3, b3)


def reference_forward(x_ncw, params):
    """Pure-JAX f32 reference of the same (eval-mode-BN) forward."""
    w1, b1, w2, b2, w3, b3 = params
    x = jnp.transpose(x_ncw, (0, 2, 1)).astype(jnp.float32)   # (B, N, 3)
    h = jnp.maximum(x @ w1 + b1, 0.0)
    h = jnp.maximum(h @ w2 + b2, 0.0)
    h = h @ w3 + b3                                           # (B, N, 512)
    return jnp.max(h, axis=1)[:, :, None]                     # (B, 512, 1)


if __name__ == "__main__":
    key = jax.random.PRNGKey(0)
    k_x, k_x2, k_p = jax.random.split(key, 3)
    params = init_params(k_p)

    forward = jax.jit(point_center_forward)

    # Case 1: B=2, N=256 (divisible, two parallel grid steps).
    B, N = 2, 256
    x = jax.random.normal(k_x, (B, C_IN, N), jnp.float32)
    out = jax.block_until_ready(forward(x, params))
    ref = reference_forward(x, params)
    assert out.shape == (B, C3, 1), out.shape
    # Layers 2/3 use bf16 MXU operands (f32 accumulate), so compare against
    # the f32 reference with a correspondingly looser tolerance.
    assert jnp.allclose(out, ref, atol=2e-2, rtol=2e-2), "mismatch vs reference"

    # Case 2: B=1, ragged N=300 (exercises duplicate-point padding path).
    x2 = jax.random.normal(k_x2, (1, C_IN, 300), jnp.float32)
    out2 = jax.block_until_ready(forward(x2, params))
    ref2 = reference_forward(x2, params)
    assert out2.shape == (1, C3, 1), out2.shape
    assert jnp.allclose(out2, ref2, atol=2e-2, rtol=2e-2), "mismatch (ragged N)"

    print("KERNEL_OK")
</pallas_src>

<mosaic_0001>
module attributes {stable_mosaic.version = 11 : i64} {
  func.func @point_center_kernel(%arg0: i32, %arg1: i32, %arg2: memref<1x256x3xf32, #tpu.memory_space<vmem>>, %arg3: memref<3x128xf32, #tpu.memory_space<vmem>>, %arg4: memref<1x128xf32, #tpu.memory_space<vmem>>, %arg5: memref<128x256xbf16, #tpu.memory_space<vmem>>, %arg6: memref<1x256xf32, #tpu.memory_space<vmem>>, %arg7: memref<256x512xbf16, #tpu.memory_space<vmem>>, %arg8: memref<1x1x512xf32, #tpu.memory_space<vmem>>) attributes {dimension_semantics = [#tpu.dimension_semantics<parallel>, #tpu.dimension_semantics<arbitrary>], iteration_bounds = array<i64: 2, 1>, scalar_prefetch = 0 : i64, scratch_operands = 0 : i64, tpu.core_type = #tpu.core_type<tc>, window_params = [{transform_indices = @transform_0, window_bounds = array<i64: 1, 256, 3>}, {pipeline_mode = #tpu.pipeline_mode<synchronous>, transform_indices = @transform_1, window_bounds = array<i64: 3, 128>}, {pipeline_mode = #tpu.pipeline_mode<synchronous>, transform_indices = @transform_2, window_bounds = array<i64: 1, 128>}, {pipeline_mode = #tpu.pipeline_mode<synchronous>, transform_indices = @transform_3, window_bounds = array<i64: 128, 256>}, {pipeline_mode = #tpu.pipeline_mode<synchronous>, transform_indices = @transform_4, window_bounds = array<i64: 1, 256>}, {pipeline_mode = #tpu.pipeline_mode<synchronous>, transform_indices = @transform_5, window_bounds = array<i64: 256, 512>}, {transform_indices = @transform_6, window_bounds = array<i64: 1, 1, 512>}]} {
    %c0_i32 = arith.constant 0 : i32
    %0 = arith.cmpi eq, %arg1, %c0_i32 : i32
    %1 = arith.extui %0 : i1 to i32
    %c0_i32_0 = arith.constant 0 : i32
    %2 = arith.cmpi ne, %1, %c0_i32_0 : i32
    scf.if %2 {
      %cst_23 = arith.constant 0xFF800000 : f32
      %45 = vector.broadcast %cst_23 : f32 to vector<1x1x512xf32>
      %c0_24 = arith.constant 0 : index
      %c0_25 = arith.constant 0 : index
      %c0_26 = arith.constant 0 : index
      %46 = vector.load %arg8[%c0_24, %c0_25, %c0_26] : memref<1x1x512xf32, #tpu.memory_space<vmem>>, vector<1x1x512xf32>
      tpu.vector_store %arg8[%c0_24, %c0_25, %c0_26], %45 {strides = array<i32>} : memref<1x1x512xf32, #tpu.memory_space<vmem>>, vector<1x1x512xf32>,
    } else {
    }
    %c0 = arith.constant 0 : index
    %c0_1 = arith.constant 0 : index
    %c0_2 = arith.constant 0 : index
    %3 = vector.load %arg2[%c0, %c0_1, %c0_2] : memref<1x256x3xf32, #tpu.memory_space<vmem>>, vector<1x256x3xf32>
    %4 = vector.shape_cast %3 : vector<1x256x3xf32> to vector<256x3xf32>
    %c0_3 = arith.constant 0 : index
    %c0_4 = arith.constant 0 : index
    %5 = vector.load %arg3[%c0_3, %c0_4] : memref<3x128xf32, #tpu.memory_space<vmem>>, vector<3x128xf32>
    %6 = vector.extract_strided_slice %4 {offsets = [0, 0], sizes = [256, 1], strides = [1, 1]} : vector<256x3xf32> to vector<256x1xf32>
    %7 = vector.extract_strided_slice %5 {offsets = [0, 0], sizes = [1, 128], strides = [1, 1]} : vector<3x128xf32> to vector<1x128xf32>
    %8 = vector.broadcast %6 : vector<256x1xf32> to vector<256x128xf32>
    %9 = vector.broadcast %7 : vector<1x128xf32> to vector<256x128xf32>
    %10 = arith.mulf %8, %9 : vector<256x128xf32>
    %11 = vector.extract_strided_slice %4 {offsets = [0, 1], sizes = [256, 1], strides = [1, 1]} : vector<256x3xf32> to vector<256x1xf32>
    %12 = vector.extract_strided_slice %5 {offsets = [1, 0], sizes = [1, 128], strides = [1, 1]} : vector<3x128xf32> to vector<1x128xf32>
    %13 = vector.broadcast %11 : vector<256x1xf32> to vector<256x128xf32>
    %14 = vector.broadcast %12 : vector<1x128xf32> to vector<256x128xf32>
    %15 = arith.mulf %13, %14 : vector<256x128xf32>
    %16 = arith.addf %10, %15 : vector<256x128xf32>
    %17 = vector.extract_strided_slice %4 {offsets = [0, 2], sizes = [256, 1], strides = [1, 1]} : vector<256x3xf32> to vector<256x1xf32>
    %18 = vector.extract_strided_slice %5 {offsets = [2, 0], sizes = [1, 128], strides = [1, 1]} : vector<3x128xf32> to vector<1x128xf32>
    %19 = vector.broadcast %17 : vector<256x1xf32> to vector<256x128xf32>
    %20 = vector.broadcast %18 : vector<1x128xf32> to vector<256x128xf32>
    %21 = arith.mulf %19, %20 : vector<256x128xf32>
    %22 = arith.addf %16, %21 : vector<256x128xf32>
    %c0_5 = arith.constant 0 : index
    %c0_6 = arith.constant 0 : index
    %23 = vector.load %arg4[%c0_5, %c0_6] : memref<1x128xf32, #tpu.memory_space<vmem>>, vector<1x128xf32>
    %24 = vector.broadcast %23 : vector<1x128xf32> to vector<256x128xf32>
    %25 = arith.addf %22, %24 : vector<256x128xf32>
    %cst = arith.constant 0.000000e+00 : f32
    %26 = vector.broadcast %cst : f32 to vector<256x128xf32>
    %27 = arith.maximumf %25, %26 : vector<256x128xf32>
    %28 = arith.truncf %27 : vector<256x128xf32> to vector<256x128xbf16>
    %c0_7 = arith.constant 0 : index
    %c0_8 = arith.constant 0 : index
    %29 = vector.load %arg5[%c0_7, %c0_8] : memref<128x256xbf16, #tpu.memory_space<vmem>>, vector<128x256xbf16>
    %cst_9 = arith.constant dense<0.000000e+00> : vector<256x256xf32>
    %30 = tpu.matmul %28, %29, %cst_9 {dimension_numbers = #tpu.dot_dimension_numbers<[1], [0], [0], [1], [0, 0, 1, 1], [], []>} : vector<256x128xbf16>, vector<128x256xbf16>, vector<256x256xf32> -> vector<256x256xf32>
    %c0_10 = arith.constant 0 : index
    %c0_11 = arith.constant 0 : index
    %31 = vector.load %arg6[%c0_10, %c0_11] : memref<1x256xf32, #tpu.memory_space<vmem>>, vector<1x256xf32>
    %32 = vector.broadcast %31 : vector<1x256xf32> to vector<256x256xf32>
    %33 = arith.addf %30, %32 : vector<256x256xf32>
    %cst_12 = arith.constant 0.000000e+00 : f32
    %34 = vector.broadcast %cst_12 : f32 to vector<256x256xf32>
    %35 = arith.maximumf %33, %34 : vector<256x256xf32>
    %36 = arith.truncf %35 : vector<256x256xf32> to vector<256x256xbf16>
    %c0_13 = arith.constant 0 : index
    %c0_14 = arith.constant 0 : index
    %37 = vector.load %arg7[%c0_13, %c0_14] : memref<256x512xbf16, #tpu.memory_space<vmem>>, vector<256x512xbf16>
    %cst_15 = arith.constant dense<0.000000e+00> : vector<256x512xf32>
    %38 = tpu.matmul %36, %37, %cst_15 {dimension_numbers = #tpu.dot_dimension_numbers<[1], [0], [0], [1], [0, 0, 1, 1], [], []>} : vector<256x256xbf16>, vector<256x512xbf16>, vector<256x512xf32> -> vector<256x512xf32>
    %39 = vector.shape_cast %38 : vector<256x512xf32> to vector<1x256x512xf32>
    %cst_16 = arith.constant dense<0xFF800000> : vector<1x512xf32>
    %40 = vector.multi_reduction <maximumf>, %39, %cst_16 [1] : vector<1x256x512xf32> to vector<1x512xf32>
    %c0_17 = arith.constant 0 : index
    %c0_18 = arith.constant 0 : index
    %c0_19 = arith.constant 0 : index
    %41 = vector.load %arg8[%c0_17, %c0_18, %c0_19] : memref<1x1x512xf32, #tpu.memory_space<vmem>>, vector<1x1x512xf32>
    %42 = vector.shape_cast %40 : vector<1x512xf32> to vector<1x1x512xf32>
    %43 = arith.maximumf %41, %42 : vector<1x1x512xf32>
    %c0_20 = arith.constant 0 : index
    %c0_21 = arith.constant 0 : index
    %c0_22 = arith.constant 0 : index
    %44 = vector.load %arg8[%c0_20, %c0_21, %c0_22] : memref<1x1x512xf32, #tpu.memory_space<vmem>>, vector<1x1x512xf32>
    tpu.vector_store %arg8[%c0_20, %c0_21, %c0_22], %43 {strides = array<i32>} : memref<1x1x512xf32, #tpu.memory_space<vmem>>, vector<1x1x512xf32>,
    return
  }
  func.func @transform_0(%arg0: i32, %arg1: i32) -> (i32, i32, i32) {
    %c0_i32 = arith.constant 0 : i32
    %c0_i32_0 = arith.constant 0 : i32
    return %arg0, %arg1, %c0_i32 : i32, i32, i32
  }
  func.func @transform_1(%arg0: i32, %arg1: i32) -> (i32, i32) {
    %c0_i32 = arith.constant 0 : i32
    %c0_i32_0 = arith.constant 0 : i32
    %c0_i32_1 = arith.constant 0 : i32
    return %c0_i32, %c0_i32_0 : i32, i32
  }
  func.func @transform_2(%arg0: i32, %arg1: i32) -> (i32, i32) {
    %c0_i32 = arith.constant 0 : i32
    %c0_i32_0 = arith.constant 0 : i32
    %c0_i32_1 = arith.constant 0 : i32
    return %c0_i32, %c0_i32_0 : i32, i32
  }
  func.func @transform_3(%arg0: i32, %arg1: i32) -> (i32, i32) {
    %c0_i32 = arith.constant 0 : i32
    %c0_i32_0 = arith.constant 0 : i32
    %c0_i32_1 = arith.constant 0 : i32
    return %c0_i32, %c0_i32_0 : i32, i32
  }
  func.func @transform_4(%arg0: i32, %arg1: i32) -> (i32, i32) {
    %c0_i32 = arith.constant 0 : i32
    %c0_i32_0 = arith.constant 0 : i32
    %c0_i32_1 = arith.constant 0 : i32
    return %c0_i32, %c0_i32_0 : i32, i32
  }
  func.func @transform_5(%arg0: i32, %arg1: i32) -> (i32, i32) {
    %c0_i32 = arith.constant 0 : i32
    %c0_i32_0 = arith.constant 0 : i32
    %c0_i32_1 = arith.constant 0 : i32
    return %c0_i32, %c0_i32_0 : i32, i32
  }
  func.func @transform_6(%arg0: i32, %arg1: i32) -> (i32, i32, i32) {
    %c0_i32 = arith.constant 0 : i32
    %c0_i32_0 = arith.constant 0 : i32
    %c0_i32_1 = arith.constant 0 : i32
    return %arg0, %c0_i32, %c0_i32_0 : i32, i32, i32
  }
}

</mosaic_0001>

<llo_original>
// kernel: point_center_forward.1
$region0: #{point_center_forward.1}
  #allocation0 [shape = 'u32[]', space=smem, size = 0x4, offset = 0x4, fixed_abs, tag = 'smem constant byte address 0x4 - core index']
  #allocation1 [shape = 'u32[144,128]{1,0:T(1,128)}', space=vmem, size = 0x12000, scoped, tag = 'internal scratch']
  %s0 = inlined_call_operand.vmem [shape: f32[2,256,3], index: 0, kind: input, shape index: {}]
  %s1 = inlined_call_operand.vmem [shape: f32[3,128], index: 1, kind: input, shape index: {}]
  %s2 = inlined_call_operand.vmem [shape: f32[1,128], index: 2, kind: input, shape index: {}]
  %s3 = inlined_call_operand.vmem [shape: bf16[128,256], index: 3, kind: input, shape index: {}]
  %s4 = inlined_call_operand.vmem [shape: f32[1,256], index: 4, kind: input, shape index: {}]
  %s5 = inlined_call_operand.vmem [shape: bf16[256,512], index: 5, kind: input, shape index: {}]
  %s6 = inlined_call_operand.vmem [shape: f32[2,1,512], index: 6, kind: output, shape index: {}]
  %s7 = sld [smem:[#allocation0]]
  $region61: #{point_center_forward.1} parent=0
    _
  %s9 = ssub.s32 1, %s7
  %s10 = scalar_select 0, %s9, %s7
  loop: start=0, step=1, limit=4
  $region2: #{point_center_forward.1} parent=0 // loop_pre_header
    _
  $region3: #{point_center_forward.1} parent=0 // loop_header
    %s12 = sphi 0, %s16
    %p13 = scmp.ge.s32.totalorder %s12, 4
    %s19 = sphi 0, %s31
    %s20 = sphi 0, %s27
    %s21 = sphi 0, %s19
    %s22 = sphi 0, %s20
    %s23 = sphi 0, %s21
    %s24 = sphi 0, %s22
    %s36 = sphi 0, %s38
    %s39 = sphi 0, %s36
    %s40 = sphi 0, %s39
    %s56 = sphi 0, %s40
    %s60 = sphi 0, %s60
    %s62 = sphi 0, %s60
    %s63 = sphi 0, %s62
    %s77 = sphi 0, %s63
    %s81 = sphi 0, %s81
    %s83 = sphi 0, %s81
    %s84 = sphi 0, %s83
    %s98 = sphi 0, %s84
    %s102 = sphi 0, %s102
    %s104 = sphi 0, %s102
    %s105 = sphi 0, %s104
    %s119 = sphi 0, %s105
    %s123 = sphi 0, %s123
    %s125 = sphi 0, %s123
    %s126 = sphi 0, %s125
    %s140 = sphi 0, %s126
    %s144 = sphi 0, %s144
    %s146 = sphi 0, %s144
    %s147 = sphi 0, %s146
    %s161 = sphi 0, %s147
    %s167 = sphi 0, %s169
    %s170 = sphi 0, %s167
    %s171 = sphi 0, %s170
    %s187 = sphi 0, %s171
  $region4: #{point_center_forward.1} parent=0 // loop_header_branch
    %15 = sbr.rel (%p13) target = $region8
  $region5: #{point_center_forward.1} parent=0 // loop_body
    %s17 = ssub.s32 %s12, 1
    %s18 = ssub.s32 %s12, 2
    %s25 = sadd.s32 1, %s20
    %p26 = scmp.ge.s32.totalorder %s25, 1
    %s27 = scalar_select %p26, 0, %s25
    %s28 = sadd.s32 1, %s19
    %s29 = scalar_select %p26, %s28, %s19
    %p30 = scmp.ge.s32.totalorder %s29, 2
    %s31 = scalar_select %p30, 0, %s29
    %s32 = ssub.s32 %s19, %s31
    %s33 = ssub.s32 %s20, %s27
    %s34 = sor.u32 %s32, %s33
    %p35 = scmp.eq.s32.totalorder %s34, 0
    %s37 = sadd.s32 %s36, 1
    %s38 = scalar_select %p35, %s36, %s37
    %p41 = pneg %p35
    %p42 = scmp.eq.s32.totalorder %s12, 1
    %p43 = por %p41, %p42
    %p44 = scmp.ne.s32.totalorder %s36, %s39
    %p45 = scmp.eq.s32.totalorder %s12, 0
    %p46 = por %p44, %p45
    %p47 = scmp.ne.s32.totalorder %s36, %s39
    %p48 = scmp.eq.s32.totalorder %s17, 1
    %p49 = por %p47, %p48
    %p50 = scmp.ne.s32.totalorder %s39, %s40
    %p51 = scmp.eq.s32.totalorder %s17, 0
    %p52 = por %p50, %p51
    %p53 = scmp.ne.s32.totalorder %s39, %s40
    %p54 = scmp.eq.s32.totalorder %s18, 1
    %p55 = por %p53, %p54
    %p57 = scmp.ne.s32.totalorder %s40, %s56
    %p58 = scmp.eq.s32.totalorder %s18, 0
    %p59 = por %p57, %p58
    %s61 = sadd.s32 %s60, 1
    %p64 = scmp.eq.s32.totalorder %s12, 1
    %p65 = scmp.ne.s32.totalorder %s60, %s62
    %p66 = scmp.eq.s32.totalorder %s12, 0
    %p67 = por %p65, %p66
    %p68 = scmp.ne.s32.totalorder %s60, %s62
    %p69 = scmp.eq.s32.totalorder %s17, 1
    %p70 = por %p68, %p69
    %p71 = scmp.ne.s32.totalorder %s62, %s63
    %p72 = scmp.eq.s32.totalorder %s17, 0
    %p73 = por %p71, %p72
    %p74 = scmp.ne.s32.totalorder %s62, %s63
    %p75 = scmp.eq.s32.totalorder %s18, 1
    %p76 = por %p74, %p75
    %p78 = scmp.ne.s32.totalorder %s63, %s77
    %p79 = scmp.eq.s32.totalorder %s18, 0
    %p80 = por %p78, %p79
    %s82 = sadd.s32 %s81, 1
    %p85 = scmp.eq.s32.totalorder %s12, 1
    %p86 = scmp.ne.s32.totalorder %s81, %s83
    %p87 = scmp.eq.s32.totalorder %s12, 0
    %p88 = por %p86, %p87
    %p89 = scmp.ne.s32.totalorder %s81, %s83
    %p90 = scmp.eq.s32.totalorder %s17, 1
    %p91 = por %p89, %p90
    %p92 = scmp.ne.s32.totalorder %s83, %s84
    %p93 = scmp.eq.s32.totalorder %s17, 0
    %p94 = por %p92, %p93
    %p95 = scmp.ne.s32.totalorder %s83, %s84
    %p96 = scmp.eq.s32.totalorder %s18, 1
    %p97 = por %p95, %p96
    %p99 = scmp.ne.s32.totalorder %s84, %s98
    %p100 = scmp.eq.s32.totalorder %s18, 0
    %p101 = por %p99, %p100
    %s103 = sadd.s32 %s102, 1
    %p106 = scmp.eq.s32.totalorder %s12, 1
    %p107 = scmp.ne.s32.totalorder %s102, %s104
    %p108 = scmp.eq.s32.totalorder %s12, 0
    %p109 = por %p107, %p108
    %p110 = scmp.ne.s32.totalorder %s102, %s104
    %p111 = scmp.eq.s32.totalorder %s17, 1
    %p112 = por %p110, %p111
    %p113 = scmp.ne.s32.totalorder %s104, %s105
    %p114 = scmp.eq.s32.totalorder %s17, 0
    %p115 = por %p113, %p114
    %p116 = scmp.ne.s32.totalorder %s104, %s105
    %p117 = scmp.eq.s32.totalorder %s18, 1
    %p118 = por %p116, %p117
    %p120 = scmp.ne.s32.totalorder %s105, %s119
    %p121 = scmp.eq.s32.totalorder %s18, 0
    %p122 = por %p120, %p121
    %s124 = sadd.s32 %s123, 1
    %p127 = scmp.eq.s32.totalorder %s12, 1
    %p128 = scmp.ne.s32.totalorder %s123, %s125
    %p129 = scmp.eq.s32.totalorder %s12, 0
    %p130 = por %p128, %p129
    %p131 = scmp.ne.s32.totalorder %s123, %s125
    %p132 = scmp.eq.s32.totalorder %s17, 1
    %p133 = por %p131, %p132
    %p134 = scmp.ne.s32.totalorder %s125, %s126
    %p135 = scmp.eq.s32.totalorder %s17, 0
    %p136 = por %p134, %p135
    %p137 = scmp.ne.s32.totalorder %s125, %s126
    %p138 = scmp.eq.s32.totalorder %s18, 1
    %p139 = por %p137, %p138
    %p141 = scmp.ne.s32.totalorder %s126, %s140
    %p142 = scmp.eq.s32.totalorder %s18, 0
    %p143 = por %p141, %p142
    %s145 = sadd.s32 %s144, 1
    %p148 = scmp.eq.s32.totalorder %s12, 1
    %p149 = scmp.ne.s32.totalorder %s144, %s146
    %p150 = scmp.eq.s32.totalorder %s12, 0
    %p151 = por %p149, %p150
    %p152 = scmp.ne.s32.totalorder %s144, %s146
    %p153 = scmp.eq.s32.totalorder %s17, 1
    %p154 = por %p152, %p153
    %p155 = scmp.ne.s32.totalorder %s146, %s147
    %p156 = scmp.eq.s32.totalorder %s17, 0
    %p157 = por %p155, %p156
    %p158 = scmp.ne.s32.totalorder %s146, %s147
    %p159 = scmp.eq.s32.totalorder %s18, 1
    %p160 = por %p158, %p159
    %p162 = scmp.ne.s32.totalorder %s147, %s161
    %p163 = scmp.eq.s32.totalorder %s18, 0
    %p164 = por %p162, %p163
    %s165 = ssub.s32 %s19, %s31
    %p166 = scmp.eq.s32.totalorder %s165, 0
    %s168 = sadd.s32 %s167, 1
    %s169 = scalar_select %p166, %s167, %s168
    %p172 = pneg %p166
    %p173 = scmp.eq.s32.totalorder %s12, 1
    %p174 = por %p172, %p173
    %p175 = scmp.ne.s32.totalorder %s167, %s170
    %p176 = scmp.eq.s32.totalorder %s12, 0
    %p177 = por %p175, %p176
    %p178 = scmp.ne.s32.totalorder %s167, %s170
    %p179 = scmp.eq.s32.totalorder %s17, 1
    %p180 = por %p178, %p179
    %p181 = scmp.ne.s32.totalorder %s170, %s171
    %p182 = scmp.eq.s32.totalorder %s17, 0
    %p183 = por %p181, %p182
    %p184 = scmp.ne.s32.totalorder %s170, %s171
    %p185 = scmp.eq.s32.totalorder %s18, 1
    %p186 = por %p184, %p185
    %p188 = scmp.ne.s32.totalorder %s171, %s187
    %p189 = scmp.eq.s32.totalorder %s18, 0
    %p190 = por %p188, %p189
    %p191 = scmp.le.s32.totalorder 1, %s12
    %p192 = scmp.lt.s32.totalorder %s12, 3
    %p193 = pnand %p191, %p192
    %p194 = pneg %p193
    // Predicated region
    $region9: #{point_center_forward.1} parent=5 // pred_check
      _
    $region10: #{point_center_forward.1} parent=5 // pred_check_branch
      %196 = sbr.rel (%p193) target = $region12
    $region11: #{point_center_forward.1} parent=5 // pred_region
      %s197 = ssub.s32 %s12, 1
      // Predicated region
      $region13: #{point_center_forward.1} parent=11 // pred_check
        %p198 = pneg %p73
      $region14: #{point_center_forward.1} parent=11 // pred_check_branch
        %200 = sbr.rel (%p198) target = $region16
      $region15: #{point_center_forward.1} parent=11 // pred_region
        _
      $region16: #{point_center_forward.1} parent=11 // pred_fallthru
        _
      // Predicated region
      $region17: #{point_center_forward.1} parent=11 // pred_check
        %p201 = pneg %p94
      $region18: #{point_center_forward.1} parent=11 // pred_check_branch
        %203 = sbr.rel (%p201) target = $region20
      $region19: #{point_center_forward.1} parent=11 // pred_region
        _
      $region20: #{point_center_forward.1} parent=11 // pred_fallthru
        _
      // Predicated region
      $region21: #{point_center_forward.1} parent=11 // pred_check
        %p204 = pneg %p115
      $region22: #{point_center_forward.1} parent=11 // pred_check_branch
        %206 = sbr.rel (%p204) target = $region24
      $region23: #{point_center_forward.1} parent=11 // pred_region
        _
      $region24: #{point_center_forward.1} parent=11 // pred_fallthru
        _
      // Predicated region
      $region25: #{point_center_forward.1} parent=11 // pred_check
        %p207 = pneg %p136
      $region26: #{point_center_forward.1} parent=11 // pred_check_branch
        %209 = sbr.rel (%p207) target = $region28
      $region27: #{point_center_forward.1} parent=11 // pred_region
        _
      $region28: #{point_center_forward.1} parent=11 // pred_fallthru
        _
      // Predicated region
      $region29: #{point_center_forward.1} parent=11 // pred_check
        %p210 = pneg %p157
      $region30: #{point_center_forward.1} parent=11 // pred_check_branch
        %212 = sbr.rel (%p210) target = $region32
      $region31: #{point_center_forward.1} parent=11 // pred_region
        _
      $region32: #{point_center_forward.1} parent=11 // pred_fallthru
        _
    $region12: #{point_center_forward.1} parent=5 // pred_fallthru
      _
    %p213 = scmp.lt.s32.totalorder %s12, 2
    // Predicated region
    $region33: #{point_center_forward.1} parent=5 // pred_check
      %p214 = pneg %p213
    $region34: #{point_center_forward.1} parent=5 // pred_check_branch
      %216 = sbr.rel (%p214) target = $region36
    $region35: #{point_center_forward.1} parent=5 // pred_region
      // Predicated region
      $region37: #{point_center_forward.1} parent=35 // pred_check
        %p217 = pneg %p46
      $region38: #{point_center_forward.1} parent=35 // pred_check_branch
        %219 = sbr.rel (%p217) target = $region40
      $region39: #{point_center_forward.1} parent=35 // pred_region
        %s220 = smul.u32 32, %s20
        %p221 = scmp.lt.s32.totalorder %s19, 1
        %s222 = scalar_select %p221, %s19, 1
        %p223 = scmp.lt.s32.totalorder %s220, 31
        %s224 = scalar_select %p223, %s220, 31
        %s225 = smul.addr %s222, 32
        %s226 = sadd.s32 %s224, %s225
        %s227 = smul.addr %s226, 8
        %s228 = scalar_lea.vmem %s0, %s227
        %s229 = smul.u32 32, %s20
      $region40: #{point_center_forward.1} parent=35 // pred_fallthru
        _
    $region36: #{point_center_forward.1} parent=5 // pred_fallthru
      _
    %p230 = scmp.le.s32.totalorder 1, %s12
    %p231 = scmp.lt.s32.totalorder %s12, 3
    %p232 = pnand %p230, %p231
    %p233 = pneg %p232
    // Predicated region
    $region41: #{point_center_forward.1} parent=5 // pred_check
      _
    $region42: #{point_center_forward.1} parent=5 // pred_check_branch
      %235 = sbr.rel (%p232) target = $region44
    $region43: #{point_center_forward.1} parent=5 // pred_region
      %s236 = ssub.s32 %s12, 1
      %s237 = smul.u32 32, %s22
      %p238 = scmp.lt.s32.totalorder %s21, 1
      %s239 = scalar_select %p238, %s21, 1
      %p240 = scmp.lt.s32.totalorder %s237, 31
      %s241 = scalar_select %p240, %s237, 31
      %s242 = smul.addr %s239, 32
      %s243 = sadd.s32 %s241, %s242
      %s244 = smul.addr %s243, 8
      %s245 = scalar_lea.vmem %s0, %s244
      %p246 = pneg %p52
      %p247 = pneg %p49
      %p248 = pneg %p73
      %p249 = pneg %p70
      %p250 = pneg %p94
      %p251 = pneg %p91
      %p252 = pneg %p115
      %p253 = pneg %p112
      %p254 = pneg %p136
      %p255 = pneg %p133
      %p256 = pneg %p157
      %p257 = pneg %p154
      %p258 = pneg %p183
      %p259 = pneg %p180
      %p260 = scmp.lt.s32.totalorder %s21, 1
      %s261 = scalar_select %p260, %s21, 1
      %s262 = smul.addr %s261, 4
      %s263 = scalar_lea.vmem %s6, %s262
      %s264 = smul.u32 32, %s22
      %p265 = scmp.lt.s32.totalorder %s21, 1
      %s266 = scalar_select %p265, %s21, 1
      %p267 = scmp.lt.s32.totalorder %s264, 31
      %s268 = scalar_select %p267, %s264, 31
      %s269 = smul.addr %s266, 32
      %s270 = sadd.s32 %s268, %s269
      %s271 = smul.addr %s270, 8
      %s272 = scalar_lea.vmem %s0, %s271
      %s273 = smul.u32 32, %s22
      %p274 = scmp.lt.s32.totalorder %s21, 1
      %s275 = scalar_select %p274, %s21, 1
      %s276 = smul.addr %s275, 4
      %s277 = scalar_lea.vmem %s6, %s276
      %p279 = scmp.eq.s32.totalorder %s22, 0
      // Predicated region
      $region45: #{point_center_forward.1} parent=43 // pred_check
        %p280 = pneg %p279
      $region46: #{point_center_forward.1} parent=43 // pred_check_branch
        %282 = sbr.rel (%p280) target = $region48
      $region47: #{point_center_forward.1} parent=43 // pred_region
        %v283 = vlaneseq
        %vm284 = vcmp.ge.s32.totalorder %v283, 0
        %vm285 = vcmp.lt.s32.totalorder %v283, 512
        %vm286 = vmand %vm284, %vm285
        %287 = vst.msk [vmem:[%s277] sm:$0xf] %vm286, -inf
      $region48: #{point_center_forward.1} parent=43 // pred_fallthru
        _
      %v288 = vld [vmem:[%s272] sm:$0xff]
      %v289 = vld [vmem:[%s272 + $0x8] sm:$0xff]
      %v290 = vld [vmem:[%s272 + $0x10] sm:$0xff]
      %v291 = vld [vmem:[%s272 + $0x18] sm:$0xff]
      %v292 = vld [vmem:[%s272 + $0x20] sm:$0xff]
      %v293 = vld [vmem:[%s272 + $0x28] sm:$0xff]
      %v294 = vld [vmem:[%s272 + $0x30] sm:$0xff]
      %v295 = vld [vmem:[%s272 + $0x38] sm:$0xff]
      %v296 = vld [vmem:[%s272 + $0x40] sm:$0xff]
      %v297 = vld [vmem:[%s272 + $0x48] sm:$0xff]
      %v298 = vld [vmem:[%s272 + $0x50] sm:$0xff]
      %v299 = vld [vmem:[%s272 + $0x58] sm:$0xff]
      %v300 = vld [vmem:[%s272 + $0x60] sm:$0xff]
      %v301 = vld [vmem:[%s272 + $0x68] sm:$0xff]
      %v302 = vld [vmem:[%s272 + $0x70] sm:$0xff]
      %v303 = vld [vmem:[%s272 + $0x78] sm:$0xff]
      %v304 = vld [vmem:[%s272 + $0x80] sm:$0xff]
      %v305 = vld [vmem:[%s272 + $0x88] sm:$0xff]
      %v306 = vld [vmem:[%s272 + $0x90] sm:$0xff]
      %v307 = vld [vmem:[%s272 + $0x98] sm:$0xff]
      %v308 = vld [vmem:[%s272 + $0xa0] sm:$0xff]
      %v309 = vld [vmem:[%s272 + $0xa8] sm:$0xff]
      %v310 = vld [vmem:[%s272 + $0xb0] sm:$0xff]
      %v311 = vld [vmem:[%s272 + $0xb8] sm:$0xff]
      %v312 = vld [vmem:[%s272 + $0xc0] sm:$0xff]
      %v313 = vld [vmem:[%s272 + $0xc8] sm:$0xff]
      %v314 = vld [vmem:[%s272 + $0xd0] sm:$0xff]
      %v315 = vld [vmem:[%s272 + $0xd8] sm:$0xff]
      %v316 = vld [vmem:[%s272 + $0xe0] sm:$0xff]
      %v317 = vld [vmem:[%s272 + $0xe8] sm:$0xff]
      %v318 = vld [vmem:[%s272 + $0xf0] sm:$0xff]
      %v319 = vld [vmem:[%s272 + $0xf8] sm:$0xff]
      %v320 = vld [vmem:[%s1] sm:$0x7]
      %322 = vset.pattern.permute.xlu0 0
      %323 = vperm.xlu0 %322, %v288
      %v324 = vpop.permute.xlu0 %323
      %327 = vset.pattern.permute.xlu0 0
      %328 = vperm.xlu0 %327, %v289
      %v329 = vpop.permute.xlu0 %328
      %332 = vset.pattern.permute.xlu0 0
      %333 = vperm.xlu0 %332, %v290
      %v334 = vpop.permute.xlu0 %333
      %337 = vset.pattern.permute.xlu0 0
      %338 = vperm.xlu0 %337, %v291
      %v339 = vpop.permute.xlu0 %338
      %342 = vset.pattern.permute.xlu0 0
      %343 = vperm.xlu0 %342, %v292
      %v344 = vpop.permute.xlu0 %343
      %347 = vset.pattern.permute.xlu0 0
      %348 = vperm.xlu0 %347, %v293
      %v349 = vpop.permute.xlu0 %348
      %352 = vset.pattern.permute.xlu0 0
      %353 = vperm.xlu0 %352, %v294
      %v354 = vpop.permute.xlu0 %353
      %357 = vset.pattern.permute.xlu0 0
      %358 = vperm.xlu0 %357, %v295
      %v359 = vpop.permute.xlu0 %358
      %362 = vset.pattern.permute.xlu0 0
      %363 = vperm.xlu0 %362, %v296
      %v364 = vpop.permute.xlu0 %363
      %367 = vset.pattern.permute.xlu0 0
      %368 = vperm.xlu0 %367, %v297
      %v369 = vpop.permute.xlu0 %368
      %372 = vset.pattern.permute.xlu0 0
      %373 = vperm.xlu0 %372, %v298
      %v374 = vpop.permute.xlu0 %373
      %377 = vset.pattern.permute.xlu0 0
      %378 = vperm.xlu0 %377, %v299
      %v379 = vpop.permute.xlu0 %378
      %382 = vset.pattern.permute.xlu0 0
      %383 = vperm.xlu0 %382, %v300
      %v384 = vpop.permute.xlu0 %383
      %387 = vset.pattern.permute.xlu0 0
      %388 = vperm.xlu0 %387, %v301
      %v389 = vpop.permute.xlu0 %388
      %392 = vset.pattern.permute.xlu0 0
      %393 = vperm.xlu0 %392, %v302
      %v394 = vpop.permute.xlu0 %393
      %397 = vset.pattern.permute.xlu0 0
      %398 = vperm.xlu0 %397, %v303
      %v399 = vpop.permute.xlu0 %398
      %402 = vset.pattern.permute.xlu0 0
      %403 = vperm.xlu0 %402, %v304
      %v404 = vpop.permute.xlu0 %403
      %407 = vset.pattern.permute.xlu0 0
      %408 = vperm.xlu0 %407, %v305
      %v409 = vpop.permute.xlu0 %408
      %412 = vset.pattern.permute.xlu0 0
      %413 = vperm.xlu0 %412, %v306
      %v414 = vpop.permute.xlu0 %413
      %417 = vset.pattern.permute.xlu0 0
      %418 = vperm.xlu0 %417, %v307
      %v419 = vpop.permute.xlu0 %418
      %422 = vset.pattern.permute.xlu0 0
      %423 = vperm.xlu0 %422, %v308
      %v424 = vpop.permute.xlu0 %423
      %427 = vset.pattern.permute.xlu0 0
      %428 = vperm.xlu0 %427, %v309
      %v429 = vpop.permute.xlu0 %428
      %432 = vset.pattern.permute.xlu0 0
      %433 = vperm.xlu0 %432, %v310
      %v434 = vpop.permute.xlu0 %433
      %437 = vset.pattern.permute.xlu0 0
      %438 = vperm.xlu0 %437, %v311
      %v439 = vpop.permute.xlu0 %438
      %442 = vset.pattern.permute.xlu0 0
      %443 = vperm.xlu0 %442, %v312
      %v444 = vpop.permute.xlu0 %443
      %447 = vset.pattern.permute.xlu0 0
      %448 = vperm.xlu0 %447, %v313
      %v449 = vpop.permute.xlu0 %448
      %452 = vset.pattern.permute.xlu0 0
      %453 = vperm.xlu0 %452, %v314
      %v454 = vpop.permute.xlu0 %453
      %457 = vset.pattern.permute.xlu0 0
      %458 = vperm.xlu0 %457, %v315
      %v459 = vpop.permute.xlu0 %458
      %462 = vset.pattern.permute.xlu0 0
      %463 = vperm.xlu0 %462, %v316
      %v464 = vpop.permute.xlu0 %463
      %467 = vset.pattern.permute.xlu0 0
      %468 = vperm.xlu0 %467, %v317
      %v469 = vpop.permute.xlu0 %468
      %472 = vset.pattern.permute.xlu0 0
      %473 = vperm.xlu0 %472, %v318
      %v474 = vpop.permute.xlu0 %473
      %477 = vset.pattern.permute.xlu0 0
      %478 = vperm.xlu0 %477, %v319
      %v479 = vpop.permute.xlu0 %478
      %v481 = vlaneseq
      %v482 = vshrl.u32 %v481, 7
      %v483 = vsub.s32 0, %v482
      %v484 = vrot.slane %v320, %v483
      %v485 = vmul.f32 %v324, %v484
      %v486 = vmul.f32 %v329, %v484
      %v487 = vmul.f32 %v334, %v484
      %v488 = vmul.f32 %v339, %v484
      %v489 = vmul.f32 %v344, %v484
      %v490 = vmul.f32 %v349, %v484
      %v491 = vmul.f32 %v354, %v484
      %v492 = vmul.f32 %v359, %v484
      %v493 = vmul.f32 %v364, %v484
      %v494 = vmul.f32 %v369, %v484
      %v495 = vmul.f32 %v374, %v484
      %v496 = vmul.f32 %v379, %v484
      %v497 = vmul.f32 %v384, %v484
      %v498 = vmul.f32 %v389, %v484
      %v499 = vmul.f32 %v394, %v484
      %v500 = vmul.f32 %v399, %v484
      %v501 = vmul.f32 %v404, %v484
      %v502 = vmul.f32 %v409, %v484
      %v503 = vmul.f32 %v414, %v484
      %v504 = vmul.f32 %v419, %v484
      %v505 = vmul.f32 %v424, %v484
      %v506 = vmul.f32 %v429, %v484
      %v507 = vmul.f32 %v434, %v484
      %v508 = vmul.f32 %v439, %v484
      %v509 = vmul.f32 %v444, %v484
      %v510 = vmul.f32 %v449, %v484
      %v511 = vmul.f32 %v454, %v484
      %v512 = vmul.f32 %v459, %v484
      %v513 = vmul.f32 %v464, %v484
      %v514 = vmul.f32 %v469, %v484
      %v515 = vmul.f32 %v474, %v484
      %v516 = vmul.f32 %v479, %v484
      %517 = vset.pattern.permute.xlu0 1
      %518 = vperm.xlu0 %517, %v288
      %v519 = vpop.permute.xlu0 %518
      %521 = vset.pattern.permute.xlu0 1
      %522 = vperm.xlu0 %521, %v289
      %v523 = vpop.permute.xlu0 %522
      %525 = vset.pattern.permute.xlu0 1
      %526 = vperm.xlu0 %525, %v290
      %v527 = vpop.permute.xlu0 %526
      %529 = vset.pattern.permute.xlu0 1
      %530 = vperm.xlu0 %529, %v291
      %v531 = vpop.permute.xlu0 %530
      %533 = vset.pattern.permute.xlu0 1
      %534 = vperm.xlu0 %533, %v292
      %v535 = vpop.permute.xlu0 %534
      %537 = vset.pattern.permute.xlu0 1
      %538 = vperm.xlu0 %537, %v293
      %v539 = vpop.permute.xlu0 %538
      %541 = vset.pattern.permute.xlu0 1
      %542 = vperm.xlu0 %541, %v294
      %v543 = vpop.permute.xlu0 %542
      %545 = vset.pattern.permute.xlu0 1
      %546 = vperm.xlu0 %545, %v295
      %v547 = vpop.permute.xlu0 %546
      %549 = vset.pattern.permute.xlu0 1
      %550 = vperm.xlu0 %549, %v296
      %v551 = vpop.permute.xlu0 %550
      %553 = vset.pattern.permute.xlu0 1
      %554 = vperm.xlu0 %553, %v297
      %v555 = vpop.permute.xlu0 %554
      %557 = vset.pattern.permute.xlu0 1
      %558 = vperm.xlu0 %557, %v298
      %v559 = vpop.permute.xlu0 %558
      %561 = vset.pattern.permute.xlu0 1
      %562 = vperm.xlu0 %561, %v299
      %v563 = vpop.permute.xlu0 %562
      %565 = vset.pattern.permute.xlu0 1
      %566 = vperm.xlu0 %565, %v300
      %v567 = vpop.permute.xlu0 %566
      %569 = vset.pattern.permute.xlu0 1
      %570 = vperm.xlu0 %569, %v301
      %v571 = vpop.permute.xlu0 %570
      %573 = vset.pattern.permute.xlu0 1
      %574 = vperm.xlu0 %573, %v302
      %v575 = vpop.permute.xlu0 %574
      %577 = vset.pattern.permute.xlu0 1
      %578 = vperm.xlu0 %577, %v303
      %v579 = vpop.permute.xlu0 %578
      %581 = vset.pattern.permute.xlu0 1
      %582 = vperm.xlu0 %581, %v304
      %v583 = vpop.permute.xlu0 %582
      %585 = vset.pattern.permute.xlu0 1
      %586 = vperm.xlu0 %585, %v305
      %v587 = vpop.permute.xlu0 %586
      %589 = vset.pattern.permute.xlu0 1
      %590 = vperm.xlu0 %589, %v306
      %v591 = vpop.permute.xlu0 %590
      %593 = vset.pattern.permute.xlu0 1
      %594 = vperm.xlu0 %593, %v307
      %v595 = vpop.permute.xlu0 %594
      %597 = vset.pattern.permute.xlu0 1
      %598 = vperm.xlu0 %597, %v308
      %v599 = vpop.permute.xlu0 %598
      %601 = vset.pattern.permute.xlu0 1
      %602 = vperm.xlu0 %601, %v309
      %v603 = vpop.permute.xlu0 %602
      %605 = vset.pattern.permute.xlu0 1
      %606 = vperm.xlu0 %605, %v310
      %v607 = vpop.permute.xlu0 %606
      %609 = vset.pattern.permute.xlu0 1
      %610 = vperm.xlu0 %609, %v311
      %v611 = vpop.permute.xlu0 %610
      %613 = vset.pattern.permute.xlu0 1
      %614 = vperm.xlu0 %613, %v312
      %v615 = vpop.permute.xlu0 %614
      %617 = vset.pattern.permute.xlu0 1
      %618 = vperm.xlu0 %617, %v313
      %v619 = vpop.permute.xlu0 %618
      %621 = vset.pattern.permute.xlu0 1
      %622 = vperm.xlu0 %621, %v314
      %v623 = vpop.permute.xlu0 %622
      %625 = vset.pattern.permute.xlu0 1
      %626 = vperm.xlu0 %625, %v315
      %v627 = vpop.permute.xlu0 %626
      %629 = vset.pattern.permute.xlu0 1
      %630 = vperm.xlu0 %629, %v316
      %v631 = vpop.permute.xlu0 %630
      %633 = vset.pattern.permute.xlu0 1
      %634 = vperm.xlu0 %633, %v317
      %v635 = vpop.permute.xlu0 %634
      %637 = vset.pattern.permute.xlu0 1
      %638 = vperm.xlu0 %637, %v318
      %v639 = vpop.permute.xlu0 %638
      %641 = vset.pattern.permute.xlu0 1
      %642 = vperm.xlu0 %641, %v319
      %v643 = vpop.permute.xlu0 %642
      %v645 = vlaneseq
      %v646 = vshrl.u32 %v645, 7
      %v647 = vsub.s32 1, %v646
      %v648 = vrot.slane %v320, %v647
      %v649 = vmul.f32 %v519, %v648
      %v650 = vmul.f32 %v523, %v648
      %v651 = vmul.f32 %v527, %v648
      %v652 = vmul.f32 %v531, %v648
      %v653 = vmul.f32 %v535, %v648
      %v654 = vmul.f32 %v539, %v648
      %v655 = vmul.f32 %v543, %v648
      %v656 = vmul.f32 %v547, %v648
      %v657 = vmul.f32 %v551, %v648
      %v658 = vmul.f32 %v555, %v648
      %v659 = vmul.f32 %v559, %v648
      %v660 = vmul.f32 %v563, %v648
      %v661 = vmul.f32 %v567, %v648
      %v662 = vmul.f32 %v571, %v648
      %v663 = vmul.f32 %v575, %v648
      %v664 = vmul.f32 %v579, %v648
      %v665 = vmul.f32 %v583, %v648
      %v666 = vmul.f32 %v587, %v648
      %v667 = vmul.f32 %v591, %v648
      %v668 = vmul.f32 %v595, %v648
      %v669 = vmul.f32 %v599, %v648
      %v670 = vmul.f32 %v603, %v648
      %v671 = vmul.f32 %v607, %v648
      %v672 = vmul.f32 %v611, %v648
      %v673 = vmul.f32 %v615, %v648
      %v674 = vmul.f32 %v619, %v648
      %v675 = vmul.f32 %v623, %v648
      %v676 = vmul.f32 %v627, %v648
      %v677 = vmul.f32 %v631, %v648
      %v678 = vmul.f32 %v635, %v648
      %v679 = vmul.f32 %v639, %v648
      %v680 = vmul.f32 %v643, %v648
      %v681 = vadd.f32 %v485, %v649
      %v682 = vadd.f32 %v486, %v650
      %v683 = vadd.f32 %v487, %v651
      %v684 = vadd.f32 %v488, %v652
      %v685 = vadd.f32 %v489, %v653
      %v686 = vadd.f32 %v490, %v654
      %v687 = vadd.f32 %v491, %v655
      %v688 = vadd.f32 %v492, %v656
      %v689 = vadd.f32 %v493, %v657
      %v690 = vadd.f32 %v494, %v658
      %v691 = vadd.f32 %v495, %v659
      %v692 = vadd.f32 %v496, %v660
      %v693 = vadd.f32 %v497, %v661
      %v694 = vadd.f32 %v498, %v662
      %v695 = vadd.f32 %v499, %v663
      %v696 = vadd.f32 %v500, %v664
      %v697 = vadd.f32 %v501, %v665
      %v698 = vadd.f32 %v502, %v666
      %v699 = vadd.f32 %v503, %v667
      %v700 = vadd.f32 %v504, %v668
      %v701 = vadd.f32 %v505, %v669
      %v702 = vadd.f32 %v506, %v670
      %v703 = vadd.f32 %v507, %v671
      %v704 = vadd.f32 %v508, %v672
      %v705 = vadd.f32 %v509, %v673
      %v706 = vadd.f32 %v510, %v674
      %v707 = vadd.f32 %v511, %v675
      %v708 = vadd.f32 %v512, %v676
      %v709 = vadd.f32 %v513, %v677
      %v710 = vadd.f32 %v514, %v678
      %v711 = vadd.f32 %v515, %v679
      %v712 = vadd.f32 %v516, %v680
      %713 = vset.pattern.permute.xlu0 2
      %714 = vperm.xlu0 %713, %v288
      %v715 = vpop.permute.xlu0 %714
      %717 = vset.pattern.permute.xlu0 2
      %718 = vperm.xlu0 %717, %v289
      %v719 = vpop.permute.xlu0 %718
      %721 = vset.pattern.permute.xlu0 2
      %722 = vperm.xlu0 %721, %v290
      %v723 = vpop.permute.xlu0 %722
      %725 = vset.pattern.permute.xlu0 2
      %726 = vperm.xlu0 %725, %v291
      %v727 = vpop.permute.xlu0 %726
      %729 = vset.pattern.permute.xlu0 2
      %730 = vperm.xlu0 %729, %v292
      %v731 = vpop.permute.xlu0 %730
      %733 = vset.pattern.permute.xlu0 2
      %734 = vperm.xlu0 %733, %v293
      %v735 = vpop.permute.xlu0 %734
      %737 = vset.pattern.permute.xlu0 2
      %738 = vperm.xlu0 %737, %v294
      %v739 = vpop.permute.xlu0 %738
      %741 = vset.pattern.permute.xlu0 2
      %742 = vperm.xlu0 %741, %v295
      %v743 = vpop.permute.xlu0 %742
      %745 = vset.pattern.permute.xlu0 2
      %746 = vperm.xlu0 %745, %v296
      %v747 = vpop.permute.xlu0 %746
      %749 = vset.pattern.permute.xlu0 2
      %750 = vperm.xlu0 %749, %v297
      %v751 = vpop.permute.xlu0 %750
      %753 = vset.pattern.permute.xlu0 2
      %754 = vperm.xlu0 %753, %v298
      %v755 = vpop.permute.xlu0 %754
      %757 = vset.pattern.permute.xlu0 2
      %758 = vperm.xlu0 %757, %v299
      %v759 = vpop.permute.xlu0 %758
      %761 = vset.pattern.permute.xlu0 2
      %762 = vperm.xlu0 %761, %v300
      %v763 = vpop.permute.xlu0 %762
      %765 = vset.pattern.permute.xlu0 2
      %766 = vperm.xlu0 %765, %v301
      %v767 = vpop.permute.xlu0 %766
      %769 = vset.pattern.permute.xlu0 2
      %770 = vperm.xlu0 %769, %v302
      %v771 = vpop.permute.xlu0 %770
      %773 = vset.pattern.permute.xlu0 2
      %774 = vperm.xlu0 %773, %v303
      %v775 = vpop.permute.xlu0 %774
      %777 = vset.pattern.permute.xlu0 2
      %778 = vperm.xlu0 %777, %v304
      %v779 = vpop.permute.xlu0 %778
      %781 = vset.pattern.permute.xlu0 2
      %782 = vperm.xlu0 %781, %v305
      %v783 = vpop.permute.xlu0 %782
      %785 = vset.pattern.permute.xlu0 2
      %786 = vperm.xlu0 %785, %v306
      %v787 = vpop.permute.xlu0 %786
      %789 = vset.pattern.permute.xlu0 2
      %790 = vperm.xlu0 %789, %v307
      %v791 = vpop.permute.xlu0 %790
      %793 = vset.pattern.permute.xlu0 2
      %794 = vperm.xlu0 %793, %v308
      %v795 = vpop.permute.xlu0 %794
      %797 = vset.pattern.permute.xlu0 2
      %798 = vperm.xlu0 %797, %v309
      %v799 = vpop.permute.xlu0 %798
      %801 = vset.pattern.permute.xlu0 2
      %802 = vperm.xlu0 %801, %v310
      %v803 = vpop.permute.xlu0 %802
      %805 = vset.pattern.permute.xlu0 2
      %806 = vperm.xlu0 %805, %v311
      %v807 = vpop.permute.xlu0 %806
      %809 = vset.pattern.permute.xlu0 2
      %810 = vperm.xlu0 %809, %v312
      %v811 = vpop.permute.xlu0 %810
      %813 = vset.pattern.permute.xlu0 2
      %814 = vperm.xlu0 %813, %v313
      %v815 = vpop.permute.xlu0 %814
      %817 = vset.pattern.permute.xlu0 2
      %818 = vperm.xlu0 %817, %v314
      %v819 = vpop.permute.xlu0 %818
      %821 = vset.pattern.permute.xlu0 2
      %822 = vperm.xlu0 %821, %v315
      %v823 = vpop.permute.xlu0 %822
      %825 = vset.pattern.permute.xlu0 2
      %826 = vperm.xlu0 %825, %v316
      %v827 = vpop.permute.xlu0 %826
      %829 = vset.pattern.permute.xlu0 2
      %830 = vperm.xlu0 %829, %v317
      %v831 = vpop.permute.xlu0 %830
      %833 = vset.pattern.permute.xlu0 2
      %834 = vperm.xlu0 %833, %v318
      %v835 = vpop.permute.xlu0 %834
      %837 = vset.pattern.permute.xlu0 2
      %838 = vperm.xlu0 %837, %v319
      %v839 = vpop.permute.xlu0 %838
      %v841 = vlaneseq
      %v842 = vshrl.u32 %v841, 7
      %v843 = vsub.s32 2, %v842
      %v844 = vrot.slane %v320, %v843
      %v845 = vmul.f32 %v715, %v844
      %v846 = vmul.f32 %v719, %v844
      %v847 = vmul.f32 %v723, %v844
      %v848 = vmul.f32 %v727, %v844
      %v849 = vmul.f32 %v731, %v844
      %v850 = vmul.f32 %v735, %v844
      %v851 = vmul.f32 %v739, %v844
      %v852 = vmul.f32 %v743, %v844
      %v853 = vmul.f32 %v747, %v844
      %v854 = vmul.f32 %v751, %v844
      %v855 = vmul.f32 %v755, %v844
      %v856 = vmul.f32 %v759, %v844
      %v857 = vmul.f32 %v763, %v844
      %v858 = vmul.f32 %v767, %v844
      %v859 = vmul.f32 %v771, %v844
      %v860 = vmul.f32 %v775, %v844
      %v861 = vmul.f32 %v779, %v844
      %v862 = vmul.f32 %v783, %v844
      %v863 = vmul.f32 %v787, %v844
      %v864 = vmul.f32 %v791, %v844
      %v865 = vmul.f32 %v795, %v844
      %v866 = vmul.f32 %v799, %v844
      %v867 = vmul.f32 %v803, %v844
      %v868 = vmul.f32 %v807, %v844
      %v869 = vmul.f32 %v811, %v844
      %v870 = vmul.f32 %v815, %v844
      %v871 = vmul.f32 %v819, %v844
      %v872 = vmul.f32 %v823, %v844
      %v873 = vmul.f32 %v827, %v844
      %v874 = vmul.f32 %v831, %v844
      %v875 = vmul.f32 %v835, %v844
      %v876 = vmul.f32 %v839, %v844
      %v877 = vadd.f32 %v681, %v845
      %v878 = vadd.f32 %v682, %v846
      %v879 = vadd.f32 %v683, %v847
      %v880 = vadd.f32 %v684, %v848
      %v881 = vadd.f32 %v685, %v849
      %v882 = vadd.f32 %v686, %v850
      %v883 = vadd.f32 %v687, %v851
      %v884 = vadd.f32 %v688, %v852
      %v885 = vadd.f32 %v689, %v853
      %v886 = vadd.f32 %v690, %v854
      %v887 = vadd.f32 %v691, %v855
      %v888 = vadd.f32 %v692, %v856
      %v889 = vadd.f32 %v693, %v857
      %v890 = vadd.f32 %v694, %v858
      %v891 = vadd.f32 %v695, %v859
      %v892 = vadd.f32 %v696, %v860
      %v893 = vadd.f32 %v697, %v861
      %v894 = vadd.f32 %v698, %v862
      %v895 = vadd.f32 %v699, %v863
      %v896 = vadd.f32 %v700, %v864
      %v897 = vadd.f32 %v701, %v865
      %v898 = vadd.f32 %v702, %v866
      %v899 = vadd.f32 %v703, %v867
      %v900 = vadd.f32 %v704, %v868
      %v901 = vadd.f32 %v705, %v869
      %v902 = vadd.f32 %v706, %v870
      %v903 = vadd.f32 %v707, %v871
      %v904 = vadd.f32 %v708, %v872
      %v905 = vadd.f32 %v709, %v873
      %v906 = vadd.f32 %v710, %v874
      %v907 = vadd.f32 %v711, %v875
      %v908 = vadd.f32 %v712, %v876
      %v909 = vld [vmem:[%s2] sm:$0x1]
      %v911 = vlaneseq
      %v912 = vshrl.u32 %v911, 7
      %v913 = vsub.s32 0, %v912
      %v914 = vrot.slane %v909, %v913
      %v916 = vadd.f32 %v877, %v914
      %v917 = vadd.f32 %v878, %v914
      %v918 = vadd.f32 %v879, %v914
      %v919 = vadd.f32 %v880, %v914
      %v920 = vadd.f32 %v881, %v914
      %v921 = vadd.f32 %v882, %v914
      %v922 = vadd.f32 %v883, %v914
      %v923 = vadd.f32 %v884, %v914
      %v924 = vadd.f32 %v885, %v914
      %v925 = vadd.f32 %v886, %v914
      %v926 = vadd.f32 %v887, %v914
      %v927 = vadd.f32 %v888, %v914
      %v928 = vadd.f32 %v889, %v914
      %v929 = vadd.f32 %v890, %v914
      %v930 = vadd.f32 %v891, %v914
      %v931 = vadd.f32 %v892, %v914
      %v932 = vadd.f32 %v893, %v914
      %v933 = vadd.f32 %v894, %v914
      %v934 = vadd.f32 %v895, %v914
      %v935 = vadd.f32 %v896, %v914
      %v936 = vadd.f32 %v897, %v914
      %v937 = vadd.f32 %v898, %v914
      %v938 = vadd.f32 %v899, %v914
      %v939 = vadd.f32 %v900, %v914
      %v940 = vadd.f32 %v901, %v914
      %v941 = vadd.f32 %v902, %v914
      %v942 = vadd.f32 %v903, %v914
      %v943 = vadd.f32 %v904, %v914
      %v944 = vadd.f32 %v905, %v914
      %v945 = vadd.f32 %v906, %v914
      %v946 = vadd.f32 %v907, %v914
      %v947 = vadd.f32 %v908, %v914
      %v948 = vmax.f32 %v916, 0.0
      %v949 = vmax.f32 %v917, 0.0
      %v950 = vmax.f32 %v918, 0.0
      %v951 = vmax.f32 %v919, 0.0
      %v952 = vmax.f32 %v920, 0.0
      %v953 = vmax.f32 %v921, 0.0
      %v954 = vmax.f32 %v922, 0.0
      %v955 = vmax.f32 %v923, 0.0
      %v956 = vmax.f32 %v924, 0.0
      %v957 = vmax.f32 %v925, 0.0
      %v958 = vmax.f32 %v926, 0.0
      %v959 = vmax.f32 %v927, 0.0
      %v960 = vmax.f32 %v928, 0.0
      %v961 = vmax.f32 %v929, 0.0
      %v962 = vmax.f32 %v930, 0.0
      %v963 = vmax.f32 %v931, 0.0
      %v964 = vmax.f32 %v932, 0.0
      %v965 = vmax.f32 %v933, 0.0
      %v966 = vmax.f32 %v934, 0.0
      %v967 = vmax.f32 %v935, 0.0
      %v968 = vmax.f32 %v936, 0.0
      %v969 = vmax.f32 %v937, 0.0
      %v970 = vmax.f32 %v938, 0.0
      %v971 = vmax.f32 %v939, 0.0
      %v972 = vmax.f32 %v940, 0.0
      %v973 = vmax.f32 %v941, 0.0
      %v974 = vmax.f32 %v942, 0.0
      %v975 = vmax.f32 %v943, 0.0
      %v976 = vmax.f32 %v944, 0.0
      %v977 = vmax.f32 %v945, 0.0
      %v978 = vmax.f32 %v946, 0.0
      %v979 = vmax.f32 %v947, 0.0
      %v980 = vpack.c.bf16 %v949, %v948
      %v981 = vpack.c.bf16 %v951, %v950
      %v982 = vpack.c.bf16 %v953, %v952
      %v983 = vpack.c.bf16 %v955, %v954
      %v984 = vpack.c.bf16 %v957, %v956
      %v985 = vpack.c.bf16 %v959, %v958
      %v986 = vpack.c.bf16 %v961, %v960
      %v987 = vpack.c.bf16 %v963, %v962
      %v988 = vpack.c.bf16 %v965, %v964
      %v989 = vpack.c.bf16 %v967, %v966
      %v990 = vpack.c.bf16 %v969, %v968
      %v991 = vpack.c.bf16 %v971, %v970
      %v992 = vpack.c.bf16 %v973, %v972
      %v993 = vpack.c.bf16 %v975, %v974
      %v994 = vpack.c.bf16 %v977, %v976
      %v995 = vpack.c.bf16 %v979, %v978
      %v996 = vld [vmem:[%s3] sm:$0xff]
      %v997 = vld [vmem:[%s3 + $0x8] sm:$0xff]
      %v998 = vld [vmem:[%s3 + $0x10] sm:$0xff]
      %v999 = vld [vmem:[%s3 + $0x18] sm:$0xff]
      %v1000 = vld [vmem:[%s3 + $0x20] sm:$0xff]
      %v1001 = vld [vmem:[%s3 + $0x28] sm:$0xff]
      %v1002 = vld [vmem:[%s3 + $0x30] sm:$0xff]
      %v1003 = vld [vmem:[%s3 + $0x38] sm:$0xff]
      %v1004 = vld [vmem:[%s3 + $0x40] sm:$0xff]
      %v1005 = vld [vmem:[%s3 + $0x48] sm:$0xff]
      %v1006 = vld [vmem:[%s3 + $0x50] sm:$0xff]
      %v1007 = vld [vmem:[%s3 + $0x58] sm:$0xff]
      %v1008 = vld [vmem:[%s3 + $0x60] sm:$0xff]
      %v1009 = vld [vmem:[%s3 + $0x68] sm:$0xff]
      %v1010 = vld [vmem:[%s3 + $0x70] sm:$0xff]
      %v1011 = vld [vmem:[%s3 + $0x78] sm:$0xff]
      %v1012 = vld [vmem:[%s4] sm:$0x3]
      %v1014 = vlaneseq
      %v1015 = vshrl.u32 %v1014, 7
      %v1016 = vsub.s32 0, %v1015
      %v1017 = vrot.slane %v1012, %v1016
      %v1018 = vlaneseq
      %v1019 = vshrl.u32 %v1018, 7
      %v1020 = vsub.s32 1, %v1019
      %v1021 = vrot.slane %v1012, %v1020
      %v1040 = vunpack.c.l.b16 %v996
      %v1041 = vunpack.c.h.b16 %v996
      %v1042 = vunpack.c.l.b16 %v997
      %v1043 = vunpack.c.h.b16 %v997
      %v1044 = vunpack.c.l.b16 %v998
      %v1045 = vunpack.c.h.b16 %v998
      %v1046 = vunpack.c.l.b16 %v999
      %v1047 = vunpack.c.h.b16 %v999
      %v1048 = vunpack.c.l.b16 %v1000
      %v1049 = vunpack.c.h.b16 %v1000
      %v1050 = vunpack.c.l.b16 %v1001
      %v1051 = vunpack.c.h.b16 %v1001
      %v1052 = vunpack.c.l.b16 %v1002
      %v1053 = vunpack.c.h.b16 %v1002
      %v1054 = vunpack.c.l.b16 %v1003
      %v1055 = vunpack.c.h.b16 %v1003
      %v1056 = vunpack.c.l.b16 %v1004
      %v1057 = vunpack.c.h.b16 %v1004
      %v1058 = vunpack.c.l.b16 %v1005
      %v1059 = vunpack.c.h.b16 %v1005
      %v1060 = vunpack.c.l.b16 %v1006
      %v1061 = vunpack.c.h.b16 %v1006
      %v1062 = vunpack.c.l.b16 %v1007
      %v1063 = vunpack.c.h.b16 %v1007
      %v1064 = vunpack.c.l.b16 %v1008
      %v1065 = vunpack.c.h.b16 %v1008
      %v1066 = vunpack.c.l.b16 %v1009
      %v1067 = vunpack.c.h.b16 %v1009
      %v1068 = vunpack.c.l.b16 %v1010
      %v1069 = vunpack.c.h.b16 %v1010
      %v1070 = vunpack.c.l.b16 %v1011
      %v1071 = vunpack.c.h.b16 %v1011
      %v1072 = vpack.c.b16 %v1042, %v1040
      %v1073 = vpack.c.b16 %v1043, %v1041
      %v1074 = vpack.c.b16 %v1046, %v1044
      %v1075 = vpack.c.b16 %v1047, %v1045
      %v1076 = vpack.c.b16 %v1050, %v1048
      %v1077 = vpack.c.b16 %v1051, %v1049
      %v1078 = vpack.c.b16 %v1054, %v1052
      %v1079 = vpack.c.b16 %v1055, %v1053
      %v1080 = vpack.c.b16 %v1058, %v1056
      %v1081 = vpack.c.b16 %v1059, %v1057
      %v1082 = vpack.c.b16 %v1062, %v1060
      %v1083 = vpack.c.b16 %v1063, %v1061
      %v1084 = vpack.c.b16 %v1066, %v1064
      %v1085 = vpack.c.b16 %v1067, %v1065
      %v1086 = vpack.c.b16 %v1070, %v1068
      %v1087 = vpack.c.b16 %v1071, %v1069
      %1104 = vmatprep.subr.bf16.mxu0 %v1073
      %1105 = vmatpush1.bf16.msra.mxu0 %v1072
      %1106 = vmatprep.subr.bf16.mxu0 %v1075
      %1107 = vmatpush1.bf16.msra.mxu0 %v1074
      %1108 = vmatprep.subr.bf16.mxu0 %v1077
      %1109 = vmatpush1.bf16.msra.mxu0 %v1076
      %1110 = vmatprep.subr.bf16.mxu0 %v1079
      %1111 = vmatpush1.bf16.msra.mxu0 %v1078
      %1112 = vmatprep.subr.bf16.mxu0 %v1081
      %1113 = vmatpush1.bf16.msra.mxu0 %v1080
      %1114 = vmatprep.subr.bf16.mxu0 %v1083
      %1115 = vmatpush1.bf16.msra.mxu0 %v1082
      %1116 = vmatprep.subr.bf16.mxu0 %v1085
      %1117 = vmatpush1.bf16.msra.mxu0 %v1084
      %1118 = vmatprep.subr.bf16.mxu0 %v1087
      %1119 = vmatpush1.bf16.msra.mxu0 %v1086
      %1120 = vmatprep.subr.bf16.mxu0 0
      %1121 = vmatpush1.bf16.msra.mxu0 0
      %1122 = vmatprep.subr.bf16.mxu0 0
      %1123 = vmatpush1.bf16.msra.mxu0 0
      %1124 = vmatprep.subr.bf16.mxu0 0
      %1125 = vmatpush1.bf16.msra.mxu0 0
      %1126 = vmatprep.subr.bf16.mxu0 0
      %1127 = vmatpush1.bf16.msra.mxu0 0
      %1128 = vmatprep.subr.bf16.mxu0 0
      %1129 = vmatpush1.bf16.msra.mxu0 0
      %1130 = vmatprep.subr.bf16.mxu0 0
      %1131 = vmatpush1.bf16.msra.mxu0 0
      %1132 = vmatprep.subr.bf16.mxu0 0
      %1133 = vmatpush1.bf16.msra.mxu0 0
      %1134 = vmatprep.subr.bf16.mxu0 0
      %1135 = vmatpush1.bf16.msra.mxu0 0
      %1136 = vmatprep.mubr.bf16.mxu0 0
      %1137 = vmatmul.mubr.bf16.gmra.mrb[0].mxu0 %v980
      %v1138 = vpop.f32.mrb[0].mxu0
      %v1139 = vadd.f32 %v1017, %v1138
      %v1140 = vpop.f32.mrb[0].mxu0
      %v1141 = vadd.f32 %v1021, %v1140
      %v1142 = vpop.f32.mrb[0].mxu0
      %v1143 = vadd.f32 %v1017, %v1142
      %v1144 = vpop.f32.mrb[0].mxu0
      %v1145 = vadd.f32 %v1021, %v1144
      %1146 = vmatprep.mubr.bf16.mxu0 0
      %1147 = vmatmul.mubr.bf16.gmra.mrb[0].mxu0 %v981
      %v1148 = vpop.f32.mrb[0].mxu0
      %v1149 = vadd.f32 %v1017, %v1148
      %v1150 = vpop.f32.mrb[0].mxu0
      %v1151 = vadd.f32 %v1021, %v1150
      %v1152 = vpop.f32.mrb[0].mxu0
      %v1153 = vadd.f32 %v1017, %v1152
      %v1154 = vpop.f32.mrb[0].mxu0
      %v1155 = vadd.f32 %v1021, %v1154
      %1156 = vmatprep.mubr.bf16.mxu0 0
      %1157 = vmatmul.mubr.bf16.gmra.mrb[0].mxu0 %v982
      %v1158 = vpop.f32.mrb[0].mxu0
      %v1159 = vadd.f32 %v1017, %v1158
      %v1160 = vpop.f32.mrb[0].mxu0
      %v1161 = vadd.f32 %v1021, %v1160
      %v1162 = vpop.f32.mrb[0].mxu0
      %v1163 = vadd.f32 %v1017, %v1162
      %v1164 = vpop.f32.mrb[0].mxu0
      %v1165 = vadd.f32 %v1021, %v1164
      %1166 = vmatprep.mubr.bf16.mxu0 0
      %1167 = vmatmul.mubr.bf16.gmra.mrb[0].mxu0 %v983
      %v1168 = vpop.f32.mrb[0].mxu0
      %v1169 = vadd.f32 %v1017, %v1168
      %v1170 = vpop.f32.mrb[0].mxu0
      %v1171 = vadd.f32 %v1021, %v1170
      %v1172 = vpop.f32.mrb[0].mxu0
      %v1173 = vadd.f32 %v1017, %v1172
      %v1174 = vpop.f32.mrb[0].mxu0
      %v1175 = vadd.f32 %v1021, %v1174
      %1176 = vmatprep.mubr.bf16.mxu0 0
      %1177 = vmatmul.mubr.bf16.gmra.mrb[0].mxu0 %v984
      %v1178 = vpop.f32.mrb[0].mxu0
      %v1179 = vadd.f32 %v1017, %v1178
      %v1180 = vpop.f32.mrb[0].mxu0
      %v1181 = vadd.f32 %v1021, %v1180
      %v1182 = vpop.f32.mrb[0].mxu0
      %v1183 = vadd.f32 %v1017, %v1182
      %v1184 = vpop.f32.mrb[0].mxu0
      %v1185 = vadd.f32 %v1021, %v1184
      %1186 = vmatprep.mubr.bf16.mxu0 0
      %1187 = vmatmul.mubr.bf16.gmra.mrb[0].mxu0 %v985
      %v1188 = vpop.f32.mrb[0].mxu0
      %v1189 = vadd.f32 %v1017, %v1188
      %v1190 = vpop.f32.mrb[0].mxu0
      %v1191 = vadd.f32 %v1021, %v1190
      %v1192 = vpop.f32.mrb[0].mxu0
      %v1193 = vadd.f32 %v1017, %v1192
      %v1194 = vpop.f32.mrb[0].mxu0
      %v1195 = vadd.f32 %v1021, %v1194
      %1196 = vmatprep.mubr.bf16.mxu0 0
      %1197 = vmatmul.mubr.bf16.gmra.mrb[0].mxu0 %v986
      %v1198 = vpop.f32.mrb[0].mxu0
      %v1199 = vadd.f32 %v1017, %v1198
      %v1200 = vpop.f32.mrb[0].mxu0
      %v1201 = vadd.f32 %v1021, %v1200
      %v1202 = vpop.f32.mrb[0].mxu0
      %v1203 = vadd.f32 %v1017, %v1202
      %v1204 = vpop.f32.mrb[0].mxu0
      %v1205 = vadd.f32 %v1021, %v1204
      %1206 = vmatprep.mubr.bf16.mxu0 0
      %1207 = vmatmul.mubr.bf16.gmra.mrb[0].mxu0 %v987
      %v1208 = vpop.f32.mrb[0].mxu0
      %v1209 = vadd.f32 %v1017, %v1208
      %v1210 = vpop.f32.mrb[0].mxu0
      %v1211 = vadd.f32 %v1021, %v1210
      %v1212 = vpop.f32.mrb[0].mxu0
      %v1213 = vadd.f32 %v1017, %v1212
      %v1214 = vpop.f32.mrb[0].mxu0
      %v1215 = vadd.f32 %v1021, %v1214
      %1216 = vmatprep.mubr.bf16.mxu0 0
      %1217 = vmatmul.mubr.bf16.gmra.mrb[0].mxu0 %v988
      %v1218 = vpop.f32.mrb[0].mxu0
      %v1219 = vadd.f32 %v1017, %v1218
      %v1220 = vpop.f32.mrb[0].mxu0
      %v1221 = vadd.f32 %v1021, %v1220
      %v1222 = vpop.f32.mrb[0].mxu0
      %v1223 = vadd.f32 %v1017, %v1222
      %v1224 = vpop.f32.mrb[0].mxu0
      %v1225 = vadd.f32 %v1021, %v1224
      %1226 = vmatprep.mubr.bf16.mxu0 0
      %1227 = vmatmul.mubr.bf16.gmra.mrb[0].mxu0 %v989
      %v1228 = vpop.f32.mrb[0].mxu0
      %v1229 = vadd.f32 %v1017, %v1228
      %v1230 = vpop.f32.mrb[0].mxu0
      %v1231 = vadd.f32 %v1021, %v1230
      %v1232 = vpop.f32.mrb[0].mxu0
      %v1233 = vadd.f32 %v1017, %v1232
      %v1234 = vpop.f32.mrb[0].mxu0
      %v1235 = vadd.f32 %v1021, %v1234
      %1236 = vmatprep.mubr.bf16.mxu0 0
      %1237 = vmatmul.mubr.bf16.gmra.mrb[0].mxu0 %v990
      %v1238 = vpop.f32.mrb[0].mxu0
      %v1239 = vadd.f32 %v1017, %v1238
      %v1240 = vpop.f32.mrb[0].mxu0
      %v1241 = vadd.f32 %v1021, %v1240
      %v1242 = vpop.f32.mrb[0].mxu0
      %v1243 = vadd.f32 %v1017, %v1242
      %v1244 = vpop.f32.mrb[0].mxu0
      %v1245 = vadd.f32 %v1021, %v1244
      %1246 = vmatprep.mubr.bf16.mxu0 0
      %1247 = vmatmul.mubr.bf16.gmra.mrb[0].mxu0 %v991
      %v1248 = vpop.f32.mrb[0].mxu0
      %v1249 = vadd.f32 %v1017, %v1248
      %v1250 = vpop.f32.mrb[0].mxu0
      %v1251 = vadd.f32 %v1021, %v1250
      %v1252 = vpop.f32.mrb[0].mxu0
      %v1253 = vadd.f32 %v1017, %v1252
      %v1254 = vpop.f32.mrb[0].mxu0
      %v1255 = vadd.f32 %v1021, %v1254
      %1256 = vmatprep.mubr.bf16.mxu0 0
      %1257 = vmatmul.mubr.bf16.gmra.mrb[0].mxu0 %v992
      %v1258 = vpop.f32.mrb[0].mxu0
      %v1259 = vadd.f32 %v1017, %v1258
      %v1260 = vpop.f32.mrb[0].mxu0
      %v1261 = vadd.f32 %v1021, %v1260
      %v1262 = vpop.f32.mrb[0].mxu0
      %v1263 = vadd.f32 %v1017, %v1262
      %v1264 = vpop.f32.mrb[0].mxu0
      %v1265 = vadd.f32 %v1021, %v1264
      %1266 = vmatprep.mubr.bf16.mxu0 0
      %1267 = vmatmul.mubr.bf16.gmra.mrb[0].mxu0 %v993
      %v1268 = vpop.f32.mrb[0].mxu0
      %v1269 = vadd.f32 %v1017, %v1268
      %v1270 = vpop.f32.mrb[0].mxu0
      %v1271 = vadd.f32 %v1021, %v1270
      %v1272 = vpop.f32.mrb[0].mxu0
      %v1273 = vadd.f32 %v1017, %v1272
      %v1274 = vpop.f32.mrb[0].mxu0
      %v1275 = vadd.f32 %v1021, %v1274
      %1276 = vmatprep.mubr.bf16.mxu0 0
      %1277 = vmatmul.mubr.bf16.gmra.mrb[0].mxu0 %v994
      %v1278 = vpop.f32.mrb[0].mxu0
      %v1279 = vadd.f32 %v1017, %v1278
      %v1280 = vpop.f32.mrb[0].mxu0
      %v1281 = vadd.f32 %v1021, %v1280
      %v1282 = vpop.f32.mrb[0].mxu0
      %v1283 = vadd.f32 %v1017, %v1282
      %v1284 = vpop.f32.mrb[0].mxu0
      %v1285 = vadd.f32 %v1021, %v1284
      %1286 = vmatprep.mubr.bf16.mxu0 0
      %1287 = vmatmul.mubr.bf16.gmra.mrb[0].mxu0 %v995
      %v1288 = vpop.f32.mrb[0].mxu0
      %v1289 = vadd.f32 %v1017, %v1288
      %v1290 = vpop.f32.mrb[0].mxu0
      %v1291 = vadd.f32 %v1021, %v1290
      %v1292 = vpop.f32.mrb[0].mxu0
      %v1293 = vadd.f32 %v1017, %v1292
      %v1294 = vpop.f32.mrb[0].mxu0
      %v1295 = vadd.f32 %v1021, %v1294
      %1296 = vdwg.mxu0
      %v1297 = vmax.f32 %v1139, 0.0
      %v1298 = vmax.f32 %v1141, 0.0
      %v1299 = vmax.f32 %v1143, 0.0
      %v1300 = vmax.f32 %v1145, 0.0
      %v1301 = vmax.f32 %v1149, 0.0
      %v1302 = vmax.f32 %v1151, 0.0
      %v1303 = vmax.f32 %v1153, 0.0
      %v1304 = vmax.f32 %v1155, 0.0
      %v1305 = vmax.f32 %v1159, 0.0
      %v1306 = vmax.f32 %v1161, 0.0
      %v1307 = vmax.f32 %v1163, 0.0
      %v1308 = vmax.f32 %v1165, 0.0
      %v1309 = vmax.f32 %v1169, 0.0
      %v1310 = vmax.f32 %v1171, 0.0
      %v1311 = vmax.f32 %v1173, 0.0
      %v1312 = vmax.f32 %v1175, 0.0
      %v1313 = vmax.f32 %v1179, 0.0
      %v1314 = vmax.f32 %v1181, 0.0
      %v1315 = vmax.f32 %v1183, 0.0
      %v1316 = vmax.f32 %v1185, 0.0
      %v1317 = vmax.f32 %v1189, 0.0
      %v1318 = vmax.f32 %v1191, 0.0
      %v1319 = vmax.f32 %v1193, 0.0
      %v1320 = vmax.f32 %v1195, 0.0
      %v1321 = vmax.f32 %v1199, 0.0
      %v1322 = vmax.f32 %v1201, 0.0
      %v1323 = vmax.f32 %v1203, 0.0
      %v1324 = vmax.f32 %v1205, 0.0
      %v1325 = vmax.f32 %v1209, 0.0
      %v1326 = vmax.f32 %v1211, 0.0
      %v1327 = vmax.f32 %v1213, 0.0
      %v1328 = vmax.f32 %v1215, 0.0
      %v1329 = vmax.f32 %v1219, 0.0
      %v1330 = vmax.f32 %v1221, 0.0
      %v1331 = vmax.f32 %v1223, 0.0
      %v1332 = vmax.f32 %v1225, 0.0
      %v1333 = vmax.f32 %v1229, 0.0
      %v1334 = vmax.f32 %v1231, 0.0
      %v1335 = vmax.f32 %v1233, 0.0
      %v1336 = vmax.f32 %v1235, 0.0
      %v1337 = vmax.f32 %v1239, 0.0
      %v1338 = vmax.f32 %v1241, 0.0
      %v1339 = vmax.f32 %v1243, 0.0
      %v1340 = vmax.f32 %v1245, 0.0
      %v1341 = vmax.f32 %v1249, 0.0
      %v1342 = vmax.f32 %v1251, 0.0
      %v1343 = vmax.f32 %v1253, 0.0
      %v1344 = vmax.f32 %v1255, 0.0
      %v1345 = vmax.f32 %v1259, 0.0
      %v1346 = vmax.f32 %v1261, 0.0
      %v1347 = vmax.f32 %v1263, 0.0
      %v1348 = vmax.f32 %v1265, 0.0
      %v1349 = vmax.f32 %v1269, 0.0
      %v1350 = vmax.f32 %v1271, 0.0
      %v1351 = vmax.f32 %v1273, 0.0
      %v1352 = vmax.f32 %v1275, 0.0
      %v1353 = vmax.f32 %v1279, 0.0
      %v1354 = vmax.f32 %v1281, 0.0
      %v1355 = vmax.f32 %v1283, 0.0
      %v1356 = vmax.f32 %v1285, 0.0
      %v1357 = vmax.f32 %v1289, 0.0
      %v1358 = vmax.f32 %v1291, 0.0
      %v1359 = vmax.f32 %v1293, 0.0
      %v1360 = vmax.f32 %v1295, 0.0
      %v1361 = vpack.c.bf16 %v1299, %v1297
      %v1362 = vpack.c.bf16 %v1300, %v1298
      %v1363 = vpack.c.bf16 %v1303, %v1301
      %v1364 = vpack.c.bf16 %v1304, %v1302
      %v1365 = vpack.c.bf16 %v1307, %v1305
      %v1366 = vpack.c.bf16 %v1308, %v1306
      %v1367 = vpack.c.bf16 %v1311, %v1309
      %v1368 = vpack.c.bf16 %v1312, %v1310
      %v1369 = vpack.c.bf16 %v1315, %v1313
      %v1370 = vpack.c.bf16 %v1316, %v1314
      %v1371 = vpack.c.bf16 %v1319, %v1317
      %v1372 = vpack.c.bf16 %v1320, %v1318
      %v1373 = vpack.c.bf16 %v1323, %v1321
      %v1374 = vpack.c.bf16 %v1324, %v1322
      %v1375 = vpack.c.bf16 %v1327, %v1325
      %v1376 = vpack.c.bf16 %v1328, %v1326
      %v1377 = vpack.c.bf16 %v1331, %v1329
      %v1378 = vpack.c.bf16 %v1332, %v1330
      %v1379 = vpack.c.bf16 %v1335, %v1333
      %v1380 = vpack.c.bf16 %v1336, %v1334
      %v1381 = vpack.c.bf16 %v1339, %v1337
      %v1382 = vpack.c.bf16 %v1340, %v1338
      %v1383 = vpack.c.bf16 %v1343, %v1341
      %v1384 = vpack.c.bf16 %v1344, %v1342
      %v1385 = vpack.c.bf16 %v1347, %v1345
      %v1386 = vpack.c.bf16 %v1348, %v1346
      %v1387 = vpack.c.bf16 %v1351, %v1349
      %v1388 = vpack.c.bf16 %v1352, %v1350
      %v1389 = vpack.c.bf16 %v1355, %v1353
      %v1390 = vpack.c.bf16 %v1356, %v1354
      %v1391 = vpack.c.bf16 %v1359, %v1357
      %v1392 = vpack.c.bf16 %v1360, %v1358
      %v1393 = vld [vmem:[%s5] sm:$0xff]
      %v1394 = vld [vmem:[%s5 + $0x8] sm:$0xff]
      %v1395 = vld [vmem:[%s5 + $0x10] sm:$0xff]
      %v1396 = vld [vmem:[%s5 + $0x18] sm:$0xff]
      %v1397 = vld [vmem:[%s5 + $0x20] sm:$0xff]
      %v1398 = vld [vmem:[%s5 + $0x28] sm:$0xff]
      %v1399 = vld [vmem:[%s5 + $0x30] sm:$0xff]
      %v1400 = vld [vmem:[%s5 + $0x38] sm:$0xff]
      %v1401 = vld [vmem:[%s5 + $0x40] sm:$0xff]
      %v1402 = vld [vmem:[%s5 + $0x48] sm:$0xff]
      %v1403 = vld [vmem:[%s5 + $0x50] sm:$0xff]
      %v1404 = vld [vmem:[%s5 + $0x58] sm:$0xff]
      %v1405 = vld [vmem:[%s5 + $0x60] sm:$0xff]
      %v1406 = vld [vmem:[%s5 + $0x68] sm:$0xff]
      %v1407 = vld [vmem:[%s5 + $0x70] sm:$0xff]
      %v1408 = vld [vmem:[%s5 + $0x78] sm:$0xff]
      %v1409 = vld [vmem:[%s5 + $0x80] sm:$0xff]
      %v1410 = vld [vmem:[%s5 + $0x88] sm:$0xff]
      %v1411 = vld [vmem:[%s5 + $0x90] sm:$0xff]
      %v1412 = vld [vmem:[%s5 + $0x98] sm:$0xff]
      %v1413 = vld [vmem:[%s5 + $0xa0] sm:$0xff]
      %v1414 = vld [vmem:[%s5 + $0xa8] sm:$0xff]
      %v1415 = vld [vmem:[%s5 + $0xb0] sm:$0xff]
      %v1416 = vld [vmem:[%s5 + $0xb8] sm:$0xff]
      %v1417 = vld [vmem:[%s5 + $0xc0] sm:$0xff]
      %v1418 = vld [vmem:[%s5 + $0xc8] sm:$0xff]
      %v1419 = vld [vmem:[%s5 + $0xd0] sm:$0xff]
      %v1420 = vld [vmem:[%s5 + $0xd8] sm:$0xff]
      %v1421 = vld [vmem:[%s5 + $0xe0] sm:$0xff]
      %v1422 = vld [vmem:[%s5 + $0xe8] sm:$0xff]
      %v1423 = vld [vmem:[%s5 + $0xf0] sm:$0xff]
      %v1424 = vld [vmem:[%s5 + $0xf8] sm:$0xff]
      %v1425 = vld [vmem:[%s5 + $0x100] sm:$0xff]
      %v1426 = vld [vmem:[%s5 + $0x108] sm:$0xff]
      %v1427 = vld [vmem:[%s5 + $0x110] sm:$0xff]
      %v1428 = vld [vmem:[%s5 + $0x118] sm:$0xff]
      %v1429 = vld [vmem:[%s5 + $0x120] sm:$0xff]
      %v1430 = vld [vmem:[%s5 + $0x128] sm:$0xff]
      %v1431 = vld [vmem:[%s5 + $0x130] sm:$0xff]
      %v1432 = vld [vmem:[%s5 + $0x138] sm:$0xff]
      %v1433 = vld [vmem:[%s5 + $0x140] sm:$0xff]
      %v1434 = vld [vmem:[%s5 + $0x148] sm:$0xff]
      %v1435 = vld [vmem:[%s5 + $0x150] sm:$0xff]
      %v1436 = vld [vmem:[%s5 + $0x158] sm:$0xff]
      %v1437 = vld [vmem:[%s5 + $0x160] sm:$0xff]
      %v1438 = vld [vmem:[%s5 + $0x168] sm:$0xff]
      %v1439 = vld [vmem:[%s5 + $0x170] sm:$0xff]
      %v1440 = vld [vmem:[%s5 + $0x178] sm:$0xff]
      %v1441 = vld [vmem:[%s5 + $0x180] sm:$0xff]
      %v1442 = vld [vmem:[%s5 + $0x188] sm:$0xff]
      %v1443 = vld [vmem:[%s5 + $0x190] sm:$0xff]
      %v1444 = vld [vmem:[%s5 + $0x198] sm:$0xff]
      %v1445 = vld [vmem:[%s5 + $0x1a0] sm:$0xff]
      %v1446 = vld [vmem:[%s5 + $0x1a8] sm:$0xff]
      %v1447 = vld [vmem:[%s5 + $0x1b0] sm:$0xff]
      %v1448 = vld [vmem:[%s5 + $0x1b8] sm:$0xff]
      %v1449 = vld [vmem:[%s5 + $0x1c0] sm:$0xff]
      %v1450 = vld [vmem:[%s5 + $0x1c8] sm:$0xff]
      %v1451 = vld [vmem:[%s5 + $0x1d0] sm:$0xff]
      %v1452 = vld [vmem:[%s5 + $0x1d8] sm:$0xff]
      %v1453 = vld [vmem:[%s5 + $0x1e0] sm:$0xff]
      %v1454 = vld [vmem:[%s5 + $0x1e8] sm:$0xff]
      %v1455 = vld [vmem:[%s5 + $0x1f0] sm:$0xff]
      %v1456 = vld [vmem:[%s5 + $0x1f8] sm:$0xff]
      %v1521 = vunpack.c.l.b16 %v1393
      %v1522 = vunpack.c.h.b16 %v1393
      %v1523 = vunpack.c.l.b16 %v1394
      %v1524 = vunpack.c.h.b16 %v1394
      %v1525 = vunpack.c.l.b16 %v1395
      %v1526 = vunpack.c.h.b16 %v1395
      %v1527 = vunpack.c.l.b16 %v1396
      %v1528 = vunpack.c.h.b16 %v1396
      %v1529 = vunpack.c.l.b16 %v1397
      %v1530 = vunpack.c.h.b16 %v1397
      %v1531 = vunpack.c.l.b16 %v1398
      %v1532 = vunpack.c.h.b16 %v1398
      %v1533 = vunpack.c.l.b16 %v1399
      %v1534 = vunpack.c.h.b16 %v1399
      %v1535 = vunpack.c.l.b16 %v1400
      %v1536 = vunpack.c.h.b16 %v1400
      %v1537 = vunpack.c.l.b16 %v1401
      %v1538 = vunpack.c.h.b16 %v1401
      %v1539 = vunpack.c.l.b16 %v1402
      %v1540 = vunpack.c.h.b16 %v1402
      %v1541 = vunpack.c.l.b16 %v1403
      %v1542 = vunpack.c.h.b16 %v1403
      %v1543 = vunpack.c.l.b16 %v1404
      %v1544 = vunpack.c.h.b16 %v1404
      %v1545 = vunpack.c.l.b16 %v1405
      %v1546 = vunpack.c.h.b16 %v1405
      %v1547 = vunpack.c.l.b16 %v1406
      %v1548 = vunpack.c.h.b16 %v1406
      %v1549 = vunpack.c.l.b16 %v1407
      %v1550 = vunpack.c.h.b16 %v1407
      %v1551 = vunpack.c.l.b16 %v1408
      %v1552 = vunpack.c.h.b16 %v1408
      %v1553 = vunpack.c.l.b16 %v1409
      %v1554 = vunpack.c.h.b16 %v1409
      %v1555 = vunpack.c.l.b16 %v1410
      %v1556 = vunpack.c.h.b16 %v1410
      %v1557 = vunpack.c.l.b16 %v1411
      %v1558 = vunpack.c.h.b16 %v1411
      %v1559 = vunpack.c.l.b16 %v1412
      %v1560 = vunpack.c.h.b16 %v1412
      %v1561 = vunpack.c.l.b16 %v1413
      %v1562 = vunpack.c.h.b16 %v1413
      %v1563 = vunpack.c.l.b16 %v1414
      %v1564 = vunpack.c.h.b16 %v1414
      %v1565 = vunpack.c.l.b16 %v1415
      %v1566 = vunpack.c.h.b16 %v1415
      %v1567 = vunpack.c.l.b16 %v1416
      %v1568 = vunpack.c.h.b16 %v1416
      %v1569 = vunpack.c.l.b16 %v1417
      %v1570 = vunpack.c.h.b16 %v1417
      %v1571 = vunpack.c.l.b16 %v1418
      %v1572 = vunpack.c.h.b16 %v1418
      %v1573 = vunpack.c.l.b16 %v1419
      %v1574 = vunpack.c.h.b16 %v1419
      %v1575 = vunpack.c.l.b16 %v1420
      %v1576 = vunpack.c.h.b16 %v1420
      %v1577 = vunpack.c.l.b16 %v1421
      %v1578 = vunpack.c.h.b16 %v1421
      %v1579 = vunpack.c.l.b16 %v1422
      %v1580 = vunpack.c.h.b16 %v1422
      %v1581 = vunpack.c.l.b16 %v1423
      %v1582 = vunpack.c.h.b16 %v1423
      %v1583 = vunpack.c.l.b16 %v1424
      %v1584 = vunpack.c.h.b16 %v1424
      %v1585 = vunpack.c.l.b16 %v1425
      %v1586 = vunpack.c.h.b16 %v1425
      %v1587 = vunpack.c.l.b16 %v1426
      %v1588 = vunpack.c.h.b16 %v1426
      %v1589 = vunpack.c.l.b16 %v1427
      %v1590 = vunpack.c.h.b16 %v1427
      %v1591 = vunpack.c.l.b16 %v1428
      %v1592 = vunpack.c.h.b16 %v1428
      %v1593 = vunpack.c.l.b16 %v1429
      %v1594 = vunpack.c.h.b16 %v1429
      %v1595 = vunpack.c.l.b16 %v1430
      %v1596 = vunpack.c.h.b16 %v1430
      %v1597 = vunpack.c.l.b16 %v1431
      %v1598 = vunpack.c.h.b16 %v1431
      %v1599 = vunpack.c.l.b16 %v1432
      %v1600 = vunpack.c.h.b16 %v1432
      %v1601 = vunpack.c.l.b16 %v1433
      %v1602 = vunpack.c.h.b16 %v1433
      %v1603 = vunpack.c.l.b16 %v1434
      %v1604 = vunpack.c.h.b16 %v1434
      %v1605 = vunpack.c.l.b16 %v1435
      %v1606 = vunpack.c.h.b16 %v1435
      %v1607 = vunpack.c.l.b16 %v1436
      %v1608 = vunpack.c.h.b16 %v1436
      %v1609 = vunpack.c.l.b16 %v1437
      %v1610 = vunpack.c.h.b16 %v1437
      %v1611 = vunpack.c.l.b16 %v1438
      %v1612 = vunpack.c.h.b16 %v1438
      %v1613 = vunpack.c.l.b16 %v1439
      %v1614 = vunpack.c.h.b16 %v1439
      %v1615 = vunpack.c.l.b16 %v1440
      %v1616 = vunpack.c.h.b16 %v1440
      %v1617 = vunpack.c.l.b16 %v1441
      %v1618 = vunpack.c.h.b16 %v1441
      %v1619 = vunpack.c.l.b16 %v1442
      %v1620 = vunpack.c.h.b16 %v1442
      %v1621 = vunpack.c.l.b16 %v1443
      %v1622 = vunpack.c.h.b16 %v1443
      %v1623 = vunpack.c.l.b16 %v1444
      %v1624 = vunpack.c.h.b16 %v1444
      %v1625 = vunpack.c.l.b16 %v1445
      %v1626 = vunpack.c.h.b16 %v1445
      %v1627 = vunpack.c.l.b16 %v1446
      %v1628 = vunpack.c.h.b16 %v1446
      %v1629 = vunpack.c.l.b16 %v1447
      %v1630 = vunpack.c.h.b16 %v1447
      %v1631 = vunpack.c.l.b16 %v1448
      %v1632 = vunpack.c.h.b16 %v1448
      %v1633 = vunpack.c.l.b16 %v1449
      %v1634 = vunpack.c.h.b16 %v1449
      %v1635 = vunpack.c.l.b16 %v1450
      %v1636 = vunpack.c.h.b16 %v1450
      %v1637 = vunpack.c.l.b16 %v1451
      %v1638 = vunpack.c.h.b16 %v1451
      %v1639 = vunpack.c.l.b16 %v1452
      %v1640 = vunpack.c.h.b16 %v1452
      %v1641 = vunpack.c.l.b16 %v1453
      %v1642 = vunpack.c.h.b16 %v1453
      %v1643 = vunpack.c.l.b16 %v1454
      %v1644 = vunpack.c.h.b16 %v1454
      %v1645 = vunpack.c.l.b16 %v1455
      %v1646 = vunpack.c.h.b16 %v1455
      %v1647 = vunpack.c.l.b16 %v1456
      %v1648 = vunpack.c.h.b16 %v1456
      %v1649 = vpack.c.b16 %v1525, %v1521
      %v1650 = vpack.c.b16 %v1526, %v1522
      %v1651 = vpack.c.b16 %v1527, %v1523
      %v1652 = vpack.c.b16 %v1528, %v1524
      %v1653 = vpack.c.b16 %v1533, %v1529
      %v1654 = vpack.c.b16 %v1534, %v1530
      %v1655 = vpack.c.b16 %v1535, %v1531
      %v1656 = vpack.c.b16 %v1536, %v1532
      %v1657 = vpack.c.b16 %v1541, %v1537
      %v1658 = vpack.c.b16 %v1542, %v1538
      %v1659 = vpack.c.b16 %v1543, %v1539
      %v1660 = vpack.c.b16 %v1544, %v1540
      %v1661 = vpack.c.b16 %v1549, %v1545
      %v1662 = vpack.c.b16 %v1550, %v1546
      %v1663 = vpack.c.b16 %v1551, %v1547
      %v1664 = vpack.c.b16 %v1552, %v1548
      %v1665 = vpack.c.b16 %v1557, %v1553
      %v1666 = vpack.c.b16 %v1558, %v1554
      %v1667 = vpack.c.b16 %v1559, %v1555
      %v1668 = vpack.c.b16 %v1560, %v1556
      %v1669 = vpack.c.b16 %v1565, %v1561
      %v1670 = vpack.c.b16 %v1566, %v1562
      %v1671 = vpack.c.b16 %v1567, %v1563
      %v1672 = vpack.c.b16 %v1568, %v1564
      %v1673 = vpack.c.b16 %v1573, %v1569
      %v1674 = vpack.c.b16 %v1574, %v1570
      %v1675 = vpack.c.b16 %v1575, %v1571
      %v1676 = vpack.c.b16 %v1576, %v1572
      %v1677 = vpack.c.b16 %v1581, %v1577
      %v1678 = vpack.c.b16 %v1582, %v1578
      %v1679 = vpack.c.b16 %v1583, %v1579
      %v1680 = vpack.c.b16 %v1584, %v1580
      %v1681 = vpack.c.b16 %v1589, %v1585
      %v1682 = vpack.c.b16 %v1590, %v1586
      %v1683 = vpack.c.b16 %v1591, %v1587
      %v1684 = vpack.c.b16 %v1592, %v1588
      %v1685 = vpack.c.b16 %v1597, %v1593
      %v1686 = vpack.c.b16 %v1598, %v1594
      %v1687 = vpack.c.b16 %v1599, %v1595
      %v1688 = vpack.c.b16 %v1600, %v1596
      %v1689 = vpack.c.b16 %v1605, %v1601
      %v1690 = vpack.c.b16 %v1606, %v1602
      %v1691 = vpack.c.b16 %v1607, %v1603
      %v1692 = vpack.c.b16 %v1608, %v1604
      %v1693 = vpack.c.b16 %v1613, %v1609
      %v1694 = vpack.c.b16 %v1614, %v1610
      %v1695 = vpack.c.b16 %v1615, %v1611
      %v1696 = vpack.c.b16 %v1616, %v1612
      %v1697 = vpack.c.b16 %v1621, %v1617
      %v1698 = vpack.c.b16 %v1622, %v1618
      %v1699 = vpack.c.b16 %v1623, %v1619
      %v1700 = vpack.c.b16 %v1624, %v1620
      %v1701 = vpack.c.b16 %v1629, %v1625
      %v1702 = vpack.c.b16 %v1630, %v1626
      %v1703 = vpack.c.b16 %v1631, %v1627
      %v1704 = vpack.c.b16 %v1632, %v1628
      %v1705 = vpack.c.b16 %v1637, %v1633
      %v1706 = vpack.c.b16 %v1638, %v1634
      %v1707 = vpack.c.b16 %v1639, %v1635
      %v1708 = vpack.c.b16 %v1640, %v1636
      %v1709 = vpack.c.b16 %v1645, %v1641
      %v1710 = vpack.c.b16 %v1646, %v1642
      %v1711 = vpack.c.b16 %v1647, %v1643
      %v1712 = vpack.c.b16 %v1648, %v1644
      %1777 = vmatprep.subr.bf16.mxu0 %v1650
      %1778 = vmatpush1.bf16.msra.mxu0 %v1649
      %1779 = vmatprep.subr.bf16.mxu0 %v1654
      %1780 = vmatpush1.bf16.msra.mxu0 %v1653
      %1781 = vmatprep.subr.bf16.mxu0 %v1658
      %1782 = vmatpush1.bf16.msra.mxu0 %v1657
      %1783 = vmatprep.subr.bf16.mxu0 %v1662
      %1784 = vmatpush1.bf16.msra.mxu0 %v1661
      %1785 = vmatprep.subr.bf16.mxu0 %v1666
      %1786 = vmatpush1.bf16.msra.mxu0 %v1665
      %1787 = vmatprep.subr.bf16.mxu0 %v1670
      %1788 = vmatpush1.bf16.msra.mxu0 %v1669
      %1789 = vmatprep.subr.bf16.mxu0 %v1674
      %1790 = vmatpush1.bf16.msra.mxu0 %v1673
      %1791 = vmatprep.subr.bf16.mxu0 %v1678
      %1792 = vmatpush1.bf16.msra.mxu0 %v1677
      %1793 = vmatprep.subr.bf16.mxu0 %v1682
      %1794 = vmatpush1.bf16.msra.mxu0 %v1681
      %1795 = vmatprep.subr.bf16.mxu0 %v1686
      %1796 = vmatpush1.bf16.msra.mxu0 %v1685
      %1797 = vmatprep.subr.bf16.mxu0 %v1690
      %1798 = vmatpush1.bf16.msra.mxu0 %v1689
      %1799 = vmatprep.subr.bf16.mxu0 %v1694
      %1800 = vmatpush1.bf16.msra.mxu0 %v1693
      %1801 = vmatprep.subr.bf16.mxu0 %v1698
      %1802 = vmatpush1.bf16.msra.mxu0 %v1697
      %1803 = vmatprep.subr.bf16.mxu0 %v1702
      %1804 = vmatpush1.bf16.msra.mxu0 %v1701
      %1805 = vmatprep.subr.bf16.mxu0 %v1706
      %1806 = vmatpush1.bf16.msra.mxu0 %v1705
      %1807 = vmatprep.subr.bf16.mxu0 %v1710
      %1808 = vmatpush1.bf16.msra.mxu0 %v1709
      %1809 = vmatprep.mubr.bf16.mxu0 %v1362
      %1810 = vmatmul.mubr.bf16.gmra.mrb[0].mxu0 %v1361
      %v1811 = vpop.f32.mrb[0].mxu0
      %v1812 = vadd.f32 0.0, %v1811
      %v1813 = vpop.f32.mrb[0].mxu0
      %v1814 = vadd.f32 0.0, %v1813
      %v1815 = vpop.f32.mrb[0].mxu0
      %v1816 = vadd.f32 0.0, %v1815
      %v1817 = vpop.f32.mrb[0].mxu0
      %v1818 = vadd.f32 0.0, %v1817
      %1819 = vmatprep.mubr.bf16.mxu0 %v1364
      %1820 = vmatmul.mubr.bf16.gmra.mrb[0].mxu0 %v1363
      %v1821 = vpop.f32.mrb[0].mxu0
      %v1822 = vadd.f32 0.0, %v1821
      %v1823 = vpop.f32.mrb[0].mxu0
      %v1824 = vadd.f32 0.0, %v1823
      %v1825 = vpop.f32.mrb[0].mxu0
      %v1826 = vadd.f32 0.0, %v1825
      %v1827 = vpop.f32.mrb[0].mxu0
      %v1828 = vadd.f32 0.0, %v1827
      %1829 = vmatprep.mubr.bf16.mxu0 %v1366
      %1830 = vmatmul.mubr.bf16.gmra.mrb[0].mxu0 %v1365
      %v1831 = vpop.f32.mrb[0].mxu0
      %v1832 = vadd.f32 0.0, %v1831
      %v1833 = vpop.f32.mrb[0].mxu0
      %v1834 = vadd.f32 0.0, %v1833
      %v1835 = vpop.f32.mrb[0].mxu0
      %v1836 = vadd.f32 0.0, %v1835
      %v1837 = vpop.f32.mrb[0].mxu0
      %v1838 = vadd.f32 0.0, %v1837
      %1839 = vmatprep.mubr.bf16.mxu0 %v1368
      %1840 = vmatmul.mubr.bf16.gmra.mrb[0].mxu0 %v1367
      %v1841 = vpop.f32.mrb[0].mxu0
      %v1842 = vadd.f32 0.0, %v1841
      %v1843 = vpop.f32.mrb[0].mxu0
      %v1844 = vadd.f32 0.0, %v1843
      %v1845 = vpop.f32.mrb[0].mxu0
      %v1846 = vadd.f32 0.0, %v1845
      %v1847 = vpop.f32.mrb[0].mxu0
      %v1848 = vadd.f32 0.0, %v1847
      %1849 = vmatprep.mubr.bf16.mxu0 %v1370
      %1850 = vmatmul.mubr.bf16.gmra.mrb[0].mxu0 %v1369
      %v1851 = vpop.f32.mrb[0].mxu0
      %v1852 = vadd.f32 0.0, %v1851
      %v1853 = vpop.f32.mrb[0].mxu0
      %v1854 = vadd.f32 0.0, %v1853
      %v1855 = vpop.f32.mrb[0].mxu0
      %v1856 = vadd.f32 0.0, %v1855
      %v1857 = vpop.f32.mrb[0].mxu0
      %v1858 = vadd.f32 0.0, %v1857
      %1859 = vmatprep.mubr.bf16.mxu0 %v1372
      %1860 = vmatmul.mubr.bf16.gmra.mrb[0].mxu0 %v1371
      %v1861 = vpop.f32.mrb[0].mxu0
      %v1862 = vadd.f32 0.0, %v1861
      %v1863 = vpop.f32.mrb[0].mxu0
      %v1864 = vadd.f32 0.0, %v1863
      %v1865 = vpop.f32.mrb[0].mxu0
      %v1866 = vadd.f32 0.0, %v1865
      %v1867 = vpop.f32.mrb[0].mxu0
      %v1868 = vadd.f32 0.0, %v1867
      %1869 = vmatprep.mubr.bf16.mxu0 %v1374
      %1870 = vmatmul.mubr.bf16.gmra.mrb[0].mxu0 %v1373
      %v1871 = vpop.f32.mrb[0].mxu0
      %v1872 = vadd.f32 0.0, %v1871
      %v1873 = vpop.f32.mrb[0].mxu0
      %v1874 = vadd.f32 0.0, %v1873
      %v1875 = vpop.f32.mrb[0].mxu0
      %v1876 = vadd.f32 0.0, %v1875
      %v1877 = vpop.f32.mrb[0].mxu0
      %v1878 = vadd.f32 0.0, %v1877
      %1879 = vmatprep.mubr.bf16.mxu0 %v1376
      %1880 = vmatmul.mubr.bf16.gmra.mrb[0].mxu0 %v1375
      %v1881 = vpop.f32.mrb[0].mxu0
      %v1882 = vadd.f32 0.0, %v1881
      %v1883 = vpop.f32.mrb[0].mxu0
      %v1884 = vadd.f32 0.0, %v1883
      %v1885 = vpop.f32.mrb[0].mxu0
      %v1886 = vadd.f32 0.0, %v1885
      %v1887 = vpop.f32.mrb[0].mxu0
      %v1888 = vadd.f32 0.0, %v1887
      %1889 = vmatprep.mubr.bf16.mxu0 %v1378
      %1890 = vmatmul.mubr.bf16.gmra.mrb[0].mxu0 %v1377
      %v1891 = vpop.f32.mrb[0].mxu0
      %v1892 = vadd.f32 0.0, %v1891
      %v1893 = vpop.f32.mrb[0].mxu0
      %v1894 = vadd.f32 0.0, %v1893
      %v1895 = vpop.f32.mrb[0].mxu0
      %v1896 = vadd.f32 0.0, %v1895
      %v1897 = vpop.f32.mrb[0].mxu0
      %v1898 = vadd.f32 0.0, %v1897
      %1899 = vmatprep.mubr.bf16.mxu0 %v1380
      %1900 = vmatmul.mubr.bf16.gmra.mrb[0].mxu0 %v1379
      %v1901 = vpop.f32.mrb[0].mxu0
      %v1902 = vadd.f32 0.0, %v1901
      %v1903 = vpop.f32.mrb[0].mxu0
      %v1904 = vadd.f32 0.0, %v1903
      %v1905 = vpop.f32.mrb[0].mxu0
      %v1906 = vadd.f32 0.0, %v1905
      %v1907 = vpop.f32.mrb[0].mxu0
      %v1908 = vadd.f32 0.0, %v1907
      %1909 = vmatprep.mubr.bf16.mxu0 %v1382
      %1910 = vmatmul.mubr.bf16.gmra.mrb[0].mxu0 %v1381
      %v1911 = vpop.f32.mrb[0].mxu0
      %v1912 = vadd.f32 0.0, %v1911
      %v1913 = vpop.f32.mrb[0].mxu0
      %v1914 = vadd.f32 0.0, %v1913
      %v1915 = vpop.f32.mrb[0].mxu0
      %v1916 = vadd.f32 0.0, %v1915
      %v1917 = vpop.f32.mrb[0].mxu0
      %v1918 = vadd.f32 0.0, %v1917
      %1919 = vmatprep.mubr.bf16.mxu0 %v1384
      %1920 = vmatmul.mubr.bf16.gmra.mrb[0].mxu0 %v1383
      %v1921 = vpop.f32.mrb[0].mxu0
      %v1922 = vadd.f32 0.0, %v1921
      %v1923 = vpop.f32.mrb[0].mxu0
      %v1924 = vadd.f32 0.0, %v1923
      %v1925 = vpop.f32.mrb[0].mxu0
      %v1926 = vadd.f32 0.0, %v1925
      %v1927 = vpop.f32.mrb[0].mxu0
      %v1928 = vadd.f32 0.0, %v1927
      %1929 = vmatprep.mubr.bf16.mxu0 %v1386
      %1930 = vmatmul.mubr.bf16.gmra.mrb[0].mxu0 %v1385
      %v1931 = vpop.f32.mrb[0].mxu0
      %v1932 = vadd.f32 0.0, %v1931
      %v1933 = vpop.f32.mrb[0].mxu0
      %v1934 = vadd.f32 0.0, %v1933
      %v1935 = vpop.f32.mrb[0].mxu0
      %v1936 = vadd.f32 0.0, %v1935
      %v1937 = vpop.f32.mrb[0].mxu0
      %v1938 = vadd.f32 0.0, %v1937
      %1939 = vmatprep.mubr.bf16.mxu0 %v1388
      %1940 = vmatmul.mubr.bf16.gmra.mrb[0].mxu0 %v1387
      %v1941 = vpop.f32.mrb[0].mxu0
      %v1942 = vadd.f32 0.0, %v1941
      %v1943 = vpop.f32.mrb[0].mxu0
      %v1944 = vadd.f32 0.0, %v1943
      %v1945 = vpop.f32.mrb[0].mxu0
      %v1946 = vadd.f32 0.0, %v1945
      %v1947 = vpop.f32.mrb[0].mxu0
      %v1948 = vadd.f32 0.0, %v1947
      %1949 = vmatprep.mubr.bf16.mxu0 %v1390
      %1950 = vmatmul.mubr.bf16.gmra.mrb[0].mxu0 %v1389
      %v1951 = vpop.f32.mrb[0].mxu0
      %v1952 = vadd.f32 0.0, %v1951
      %v1953 = vpop.f32.mrb[0].mxu0
      %v1954 = vadd.f32 0.0, %v1953
      %v1955 = vpop.f32.mrb[0].mxu0
      %v1956 = vadd.f32 0.0, %v1955
      %v1957 = vpop.f32.mrb[0].mxu0
      %v1958 = vadd.f32 0.0, %v1957
      %1959 = vmatprep.mubr.bf16.mxu0 %v1392
      %1960 = vmatmul.mubr.bf16.gmra.mrb[0].mxu0 %v1391
      %v1961 = vpop.f32.mrb[0].mxu0
      %v1962 = vadd.f32 0.0, %v1961
      %v1963 = vpop.f32.mrb[0].mxu0
      %v1964 = vadd.f32 0.0, %v1963
      %v1965 = vpop.f32.mrb[0].mxu0
      %v1966 = vadd.f32 0.0, %v1965
      %v1967 = vpop.f32.mrb[0].mxu0
      %v1968 = vadd.f32 0.0, %v1967
      %1969 = vdwg.mxu0
      %1970 = vmatprep.subr.bf16.mxu0 %v1652
      %1971 = vmatpush1.bf16.msra.mxu0 %v1651
      %1972 = vmatprep.subr.bf16.mxu0 %v1656
      %1973 = vmatpush1.bf16.msra.mxu0 %v1655
      %1974 = vmatprep.subr.bf16.mxu0 %v1660
      %1975 = vmatpush1.bf16.msra.mxu0 %v1659
      %1976 = vmatprep.subr.bf16.mxu0 %v1664
      %1977 = vmatpush1.bf16.msra.mxu0 %v1663
      %1978 = vmatprep.subr.bf16.mxu0 %v1668
      %1979 = vmatpush1.bf16.msra.mxu0 %v1667
      %1980 = vmatprep.subr.bf16.mxu0 %v1672
      %1981 = vmatpush1.bf16.msra.mxu0 %v1671
      %1982 = vmatprep.subr.bf16.mxu0 %v1676
      %1983 = vmatpush1.bf16.msra.mxu0 %v1675
      %1984 = vmatprep.subr.bf16.mxu0 %v1680
      %1985 = vmatpush1.bf16.msra.mxu0 %v1679
      %1986 = vmatprep.subr.bf16.mxu0 %v1684
      %1987 = vmatpush1.bf16.msra.mxu0 %v1683
      %1988 = vmatprep.subr.bf16.mxu0 %v1688
      %1989 = vmatpush1.bf16.msra.mxu0 %v1687
      %1990 = vmatprep.subr.bf16.mxu0 %v1692
      %1991 = vmatpush1.bf16.msra.mxu0 %v1691
      %1992 = vmatprep.subr.bf16.mxu0 %v1696
      %1993 = vmatpush1.bf16.msra.mxu0 %v1695
      %1994 = vmatprep.subr.bf16.mxu0 %v1700
      %1995 = vmatpush1.bf16.msra.mxu0 %v1699
      %1996 = vmatprep.subr.bf16.mxu0 %v1704
      %1997 = vmatpush1.bf16.msra.mxu0 %v1703
      %1998 = vmatprep.subr.bf16.mxu0 %v1708
      %1999 = vmatpush1.bf16.msra.mxu0 %v1707
      %2000 = vmatprep.subr.bf16.mxu0 %v1712
      %2001 = vmatpush1.bf16.msra.mxu0 %v1711
      %2002 = vmatprep.mubr.bf16.mxu0 %v1362
      %2003 = vmatmul.mubr.bf16.gmra.mrb[0].mxu0 %v1361
      %v2004 = vpop.f32.mrb[0].mxu0
      %v2005 = vadd.f32 0.0, %v2004
      %v2006 = vpop.f32.mrb[0].mxu0
      %v2007 = vadd.f32 0.0, %v2006
      %v2008 = vpop.f32.mrb[0].mxu0
      %v2009 = vadd.f32 0.0, %v2008
      %v2010 = vpop.f32.mrb[0].mxu0
      %v2011 = vadd.f32 0.0, %v2010
      %2012 = vmatprep.mubr.bf16.mxu0 %v1364
      %2013 = vmatmul.mubr.bf16.gmra.mrb[0].mxu0 %v1363
      %v2014 = vpop.f32.mrb[0].mxu0
      %v2015 = vadd.f32 0.0, %v2014
      %v2016 = vpop.f32.mrb[0].mxu0
      %v2017 = vadd.f32 0.0, %v2016
      %v2018 = vpop.f32.mrb[0].mxu0
      %v2019 = vadd.f32 0.0, %v2018
      %v2020 = vpop.f32.mrb[0].mxu0
      %v2021 = vadd.f32 0.0, %v2020
      %2022 = vmatprep.mubr.bf16.mxu0 %v1366
      %2023 = vmatmul.mubr.bf16.gmra.mrb[0].mxu0 %v1365
      %v2024 = vpop.f32.mrb[0].mxu0
      %v2025 = vadd.f32 0.0, %v2024
      %v2026 = vpop.f32.mrb[0].mxu0
      %v2027 = vadd.f32 0.0, %v2026
      %v2028 = vpop.f32.mrb[0].mxu0
      %v2029 = vadd.f32 0.0, %v2028
      %v2030 = vpop.f32.mrb[0].mxu0
      %v2031 = vadd.f32 0.0, %v2030
      %2032 = vmatprep.mubr.bf16.mxu0 %v1368
      %2033 = vmatmul.mubr.bf16.gmra.mrb[0].mxu0 %v1367
      %v2034 = vpop.f32.mrb[0].mxu0
      %v2035 = vadd.f32 0.0, %v2034
      %v2036 = vpop.f32.mrb[0].mxu0
      %v2037 = vadd.f32 0.0, %v2036
      %v2038 = vpop.f32.mrb[0].mxu0
      %v2039 = vadd.f32 0.0, %v2038
      %v2040 = vpop.f32.mrb[0].mxu0
      %v2041 = vadd.f32 0.0, %v2040
      %2042 = vmatprep.mubr.bf16.mxu0 %v1370
      %2043 = vmatmul.mubr.bf16.gmra.mrb[0].mxu0 %v1369
      %v2044 = vpop.f32.mrb[0].mxu0
      %v2045 = vadd.f32 0.0, %v2044
      %v2046 = vpop.f32.mrb[0].mxu0
      %v2047 = vadd.f32 0.0, %v2046
      %v2048 = vpop.f32.mrb[0].mxu0
      %v2049 = vadd.f32 0.0, %v2048
      %v2050 = vpop.f32.mrb[0].mxu0
      %v2051 = vadd.f32 0.0, %v2050
      %2052 = vmatprep.mubr.bf16.mxu0 %v1372
      %2053 = vmatmul.mubr.bf16.gmra.mrb[0].mxu0 %v1371
      %v2054 = vpop.f32.mrb[0].mxu0
      %v2055 = vadd.f32 0.0, %v2054
      %v2056 = vpop.f32.mrb[0].mxu0
      %v2057 = vadd.f32 0.0, %v2056
      %v2058 = vpop.f32.mrb[0].mxu0
      %v2059 = vadd.f32 0.0, %v2058
      %v2060 = vpop.f32.mrb[0].mxu0
      %v2061 = vadd.f32 0.0, %v2060
      %2062 = vmatprep.mubr.bf16.mxu0 %v1374
      %2063 = vmatmul.mubr.bf16.gmra.mrb[0].mxu0 %v1373
      %v2064 = vpop.f32.mrb[0].mxu0
      %v2065 = vadd.f32 0.0, %v2064
      %v2066 = vpop.f32.mrb[0].mxu0
      %v2067 = vadd.f32 0.0, %v2066
      %v2068 = vpop.f32.mrb[0].mxu0
      %v2069 = vadd.f32 0.0, %v2068
      %v2070 = vpop.f32.mrb[0].mxu0
      %v2071 = vadd.f32 0.0, %v2070
      %2072 = vmatprep.mubr.bf16.mxu0 %v1376
      %2073 = vmatmul.mubr.bf16.gmra.mrb[0].mxu0 %v1375
      %v2074 = vpop.f32.mrb[0].mxu0
      %v2075 = vadd.f32 0.0, %v2074
      %v2076 = vpop.f32.mrb[0].mxu0
      %v2077 = vadd.f32 0.0, %v2076
      %v2078 = vpop.f32.mrb[0].mxu0
      %v2079 = vadd.f32 0.0, %v2078
      %v2080 = vpop.f32.mrb[0].mxu0
      %v2081 = vadd.f32 0.0, %v2080
      %2082 = vmatprep.mubr.bf16.mxu0 %v1378
      %2083 = vmatmul.mubr.bf16.gmra.mrb[0].mxu0 %v1377
      %v2084 = vpop.f32.mrb[0].mxu0
      %v2085 = vadd.f32 0.0, %v2084
      %v2086 = vpop.f32.mrb[0].mxu0
      %v2087 = vadd.f32 0.0, %v2086
      %v2088 = vpop.f32.mrb[0].mxu0
      %v2089 = vadd.f32 0.0, %v2088
      %v2090 = vpop.f32.mrb[0].mxu0
      %v2091 = vadd.f32 0.0, %v2090
      %2092 = vmatprep.mubr.bf16.mxu0 %v1380
      %2093 = vmatmul.mubr.bf16.gmra.mrb[0].mxu0 %v1379
      %v2094 = vpop.f32.mrb[0].mxu0
      %v2095 = vadd.f32 0.0, %v2094
      %v2096 = vpop.f32.mrb[0].mxu0
      %v2097 = vadd.f32 0.0, %v2096
      %v2098 = vpop.f32.mrb[0].mxu0
      %v2099 = vadd.f32 0.0, %v2098
      %v2100 = vpop.f32.mrb[0].mxu0
      %v2101 = vadd.f32 0.0, %v2100
      %2102 = vmatprep.mubr.bf16.mxu0 %v1382
      %2103 = vmatmul.mubr.bf16.gmra.mrb[0].mxu0 %v1381
      %v2104 = vpop.f32.mrb[0].mxu0
      %v2105 = vadd.f32 0.0, %v2104
      %v2106 = vpop.f32.mrb[0].mxu0
      %v2107 = vadd.f32 0.0, %v2106
      %v2108 = vpop.f32.mrb[0].mxu0
      %v2109 = vadd.f32 0.0, %v2108
      %v2110 = vpop.f32.mrb[0].mxu0
      %v2111 = vadd.f32 0.0, %v2110
      %2112 = vmatprep.mubr.bf16.mxu0 %v1384
      %2113 = vmatmul.mubr.bf16.gmra.mrb[0].mxu0 %v1383
      %v2114 = vpop.f32.mrb[0].mxu0
      %v2115 = vadd.f32 0.0, %v2114
      %v2116 = vpop.f32.mrb[0].mxu0
      %v2117 = vadd.f32 0.0, %v2116
      %v2118 = vpop.f32.mrb[0].mxu0
      %v2119 = vadd.f32 0.0, %v2118
      %v2120 = vpop.f32.mrb[0].mxu0
      %v2121 = vadd.f32 0.0, %v2120
      %2122 = vmatprep.mubr.bf16.mxu0 %v1386
      %2123 = vmatmul.mubr.bf16.gmra.mrb[0].mxu0 %v1385
      %v2124 = vpop.f32.mrb[0].mxu0
      %v2125 = vadd.f32 0.0, %v2124
      %v2126 = vpop.f32.mrb[0].mxu0
      %v2127 = vadd.f32 0.0, %v2126
      %v2128 = vpop.f32.mrb[0].mxu0
      %v2129 = vadd.f32 0.0, %v2128
      %v2130 = vpop.f32.mrb[0].mxu0
      %v2131 = vadd.f32 0.0, %v2130
      %2132 = vmatprep.mubr.bf16.mxu0 %v1388
      %2133 = vmatmul.mubr.bf16.gmra.mrb[0].mxu0 %v1387
      %v2134 = vpop.f32.mrb[0].mxu0
      %v2135 = vadd.f32 0.0, %v2134
      %v2136 = vpop.f32.mrb[0].mxu0
      %v2137 = vadd.f32 0.0, %v2136
      %v2138 = vpop.f32.mrb[0].mxu0
      %v2139 = vadd.f32 0.0, %v2138
      %v2140 = vpop.f32.mrb[0].mxu0
      %v2141 = vadd.f32 0.0, %v2140
      %2142 = vmatprep.mubr.bf16.mxu0 %v1390
      %2143 = vmatmul.mubr.bf16.gmra.mrb[0].mxu0 %v1389
      %v2144 = vpop.f32.mrb[0].mxu0
      %v2145 = vadd.f32 0.0, %v2144
      %v2146 = vpop.f32.mrb[0].mxu0
      %v2147 = vadd.f32 0.0, %v2146
      %v2148 = vpop.f32.mrb[0].mxu0
      %v2149 = vadd.f32 0.0, %v2148
      %v2150 = vpop.f32.mrb[0].mxu0
      %v2151 = vadd.f32 0.0, %v2150
      %2152 = vmatprep.mubr.bf16.mxu0 %v1392
      %2153 = vmatmul.mubr.bf16.gmra.mrb[0].mxu0 %v1391
      %v2154 = vpop.f32.mrb[0].mxu0
      %v2155 = vadd.f32 0.0, %v2154
      %v2156 = vpop.f32.mrb[0].mxu0
      %v2157 = vadd.f32 0.0, %v2156
      %v2158 = vpop.f32.mrb[0].mxu0
      %v2159 = vadd.f32 0.0, %v2158
      %v2160 = vpop.f32.mrb[0].mxu0
      %v2161 = vadd.f32 0.0, %v2160
      %2162 = vdwg.mxu0
      %v2163 = vmax.f32 %v1812, %v1816
      %v2164 = vmax.f32 %v2163, %v1822
      %v2165 = vmax.f32 %v2164, %v1826
      %v2166 = vmax.f32 %v2165, %v1832
      %v2167 = vmax.f32 %v2166, %v1836
      %v2168 = vmax.f32 %v2167, %v1842
      %v2169 = vmax.f32 %v2168, %v1846
      %v2170 = vmax.f32 %v2169, %v1852
      %v2171 = vmax.f32 %v2170, %v1856
      %v2172 = vmax.f32 %v2171, %v1862
      %v2173 = vmax.f32 %v2172, %v1866
      %v2174 = vmax.f32 %v2173, %v1872
      %v2175 = vmax.f32 %v2174, %v1876
      %v2176 = vmax.f32 %v2175, %v1882
      %v2177 = vmax.f32 %v2176, %v1886
      %v2178 = vmax.f32 %v2177, %v1892
      %v2179 = vmax.f32 %v2178, %v1896
      %v2180 = vmax.f32 %v2179, %v1902
      %v2181 = vmax.f32 %v2180, %v1906
      %v2182 = vmax.f32 %v2181, %v1912
      %v2183 = vmax.f32 %v2182, %v1916
      %v2184 = vmax.f32 %v2183, %v1922
      %v2185 = vmax.f32 %v2184, %v1926
      %v2186 = vmax.f32 %v2185, %v1932
      %v2187 = vmax.f32 %v2186, %v1936
      %v2188 = vmax.f32 %v2187, %v1942
      %v2189 = vmax.f32 %v2188, %v1946
      %v2190 = vmax.f32 %v2189, %v1952
      %v2191 = vmax.f32 %v2190, %v1956
      %v2192 = vmax.f32 %v2191, %v1962
      %v2193 = vmax.f32 %v2192, %v1966
      %v2194 = vrot.slane %v2193, 4
      %v2195 = vmax.f32 %v2193, %v2194
      %v2196 = vrot.slane %v2195, 2
      %v2197 = vmax.f32 %v2195, %v2196
      %v2198 = vrot.slane %v2197, 1
      %v2199 = vmax.f32 %v2197, %v2198
      %v2200 = vmax.f32 %v1814, %v1818
      %v2201 = vmax.f32 %v2200, %v1824
      %v2202 = vmax.f32 %v2201, %v1828
      %v2203 = vmax.f32 %v2202, %v1834
      %v2204 = vmax.f32 %v2203, %v1838
      %v2205 = vmax.f32 %v2204, %v1844
      %v2206 = vmax.f32 %v2205, %v1848
      %v2207 = vmax.f32 %v2206, %v1854
      %v2208 = vmax.f32 %v2207, %v1858
      %v2209 = vmax.f32 %v2208, %v1864
      %v2210 = vmax.f32 %v2209, %v1868
      %v2211 = vmax.f32 %v2210, %v1874
      %v2212 = vmax.f32 %v2211, %v1878
      %v2213 = vmax.f32 %v2212, %v1884
      %v2214 = vmax.f32 %v2213, %v1888
      %v2215 = vmax.f32 %v2214, %v1894
      %v2216 = vmax.f32 %v2215, %v1898
      %v2217 = vmax.f32 %v2216, %v1904
      %v2218 = vmax.f32 %v2217, %v1908
      %v2219 = vmax.f32 %v2218, %v1914
      %v2220 = vmax.f32 %v2219, %v1918
      %v2221 = vmax.f32 %v2220, %v1924
      %v2222 = vmax.f32 %v2221, %v1928
      %v2223 = vmax.f32 %v2222, %v1934
      %v2224 = vmax.f32 %v2223, %v1938
      %v2225 = vmax.f32 %v2224, %v1944
      %v2226 = vmax.f32 %v2225, %v1948
      %v2227 = vmax.f32 %v2226, %v1954
      %v2228 = vmax.f32 %v2227, %v1958
      %v2229 = vmax.f32 %v2228, %v1964
      %v2230 = vmax.f32 %v2229, %v1968
      %v2231 = vrot.slane %v2230, 4
      %v2232 = vmax.f32 %v2230, %v2231
      %v2233 = vrot.slane %v2232, 2
      %v2234 = vmax.f32 %v2232, %v2233
      %v2235 = vrot.slane %v2234, 1
      %v2236 = vmax.f32 %v2234, %v2235
      %v2237 = vmax.f32 %v2005, %v2009
      %v2238 = vmax.f32 %v2237, %v2015
      %v2239 = vmax.f32 %v2238, %v2019
      %v2240 = vmax.f32 %v2239, %v2025
      %v2241 = vmax.f32 %v2240, %v2029
      %v2242 = vmax.f32 %v2241, %v2035
      %v2243 = vmax.f32 %v2242, %v2039
      %v2244 = vmax.f32 %v2243, %v2045
      %v2245 = vmax.f32 %v2244, %v2049
      %v2246 = vmax.f32 %v2245, %v2055
      %v2247 = vmax.f32 %v2246, %v2059
      %v2248 = vmax.f32 %v2247, %v2065
      %v2249 = vmax.f32 %v2248, %v2069
      %v2250 = vmax.f32 %v2249, %v2075
      %v2251 = vmax.f32 %v2250, %v2079
      %v2252 = vmax.f32 %v2251, %v2085
      %v2253 = vmax.f32 %v2252, %v2089
      %v2254 = vmax.f32 %v2253, %v2095
      %v2255 = vmax.f32 %v2254, %v2099
      %v2256 = vmax.f32 %v2255, %v2105
      %v2257 = vmax.f32 %v2256, %v2109
      %v2258 = vmax.f32 %v2257, %v2115
      %v2259 = vmax.f32 %v2258, %v2119
      %v2260 = vmax.f32 %v2259, %v2125
      %v2261 = vmax.f32 %v2260, %v2129
      %v2262 = vmax.f32 %v2261, %v2135
      %v2263 = vmax.f32 %v2262, %v2139
      %v2264 = vmax.f32 %v2263, %v2145
      %v2265 = vmax.f32 %v2264, %v2149
      %v2266 = vmax.f32 %v2265, %v2155
      %v2267 = vmax.f32 %v2266, %v2159
      %v2268 = vrot.slane %v2267, 4
      %v2269 = vmax.f32 %v2267, %v2268
      %v2270 = vrot.slane %v2269, 2
      %v2271 = vmax.f32 %v2269, %v2270
      %v2272 = vrot.slane %v2271, 1
      %v2273 = vmax.f32 %v2271, %v2272
      %v2274 = vmax.f32 %v2007, %v2011
      %v2275 = vmax.f32 %v2274, %v2017
      %v2276 = vmax.f32 %v2275, %v2021
      %v2277 = vmax.f32 %v2276, %v2027
      %v2278 = vmax.f32 %v2277, %v2031
      %v2279 = vmax.f32 %v2278, %v2037
      %v2280 = vmax.f32 %v2279, %v2041
      %v2281 = vmax.f32 %v2280, %v2047
      %v2282 = vmax.f32 %v2281, %v2051
      %v2283 = vmax.f32 %v2282, %v2057
      %v2284 = vmax.f32 %v2283, %v2061
      %v2285 = vmax.f32 %v2284, %v2067
      %v2286 = vmax.f32 %v2285, %v2071
      %v2287 = vmax.f32 %v2286, %v2077
      %v2288 = vmax.f32 %v2287, %v2081
      %v2289 = vmax.f32 %v2288, %v2087
      %v2290 = vmax.f32 %v2289, %v2091
      %v2291 = vmax.f32 %v2290, %v2097
      %v2292 = vmax.f32 %v2291, %v2101
      %v2293 = vmax.f32 %v2292, %v2107
      %v2294 = vmax.f32 %v2293, %v2111
      %v2295 = vmax.f32 %v2294, %v2117
      %v2296 = vmax.f32 %v2295, %v2121
      %v2297 = vmax.f32 %v2296, %v2127
      %v2298 = vmax.f32 %v2297, %v2131
      %v2299 = vmax.f32 %v2298, %v2137
      %v2300 = vmax.f32 %v2299, %v2141
      %v2301 = vmax.f32 %v2300, %v2147
      %v2302 = vmax.f32 %v2301, %v2151
      %v2303 = vmax.f32 %v2302, %v2157
      %v2304 = vmax.f32 %v2303, %v2161
      %v2305 = vrot.slane %v2304, 4
      %v2306 = vmax.f32 %v2304, %v2305
      %v2307 = vrot.slane %v2306, 2
      %v2308 = vmax.f32 %v2306, %v2307
      %v2309 = vrot.slane %v2308, 1
      %v2310 = vmax.f32 %v2308, %v2309
      %v2311 = vld [vmem:[%s277] sm:$0xf]
      %v2316 = vcombine.low %v2199, %v2236
      %v2317 = vcombine.low %v2273, %v2310
      %v2319 = vunpack.c.l.s4 1966171168
      %v2320 = vunpack.c.0.s8 %v2319
      %v2321 = vlaneseq
      %v2322 = vshrl.u32 %v2321, 7
      %v2323 = vsub.s32 %v2320, %v2322
      %v2324 = vrot.slane %v2316, %v2323
      %v2326 = vunpack.c.l.s4 1966171168
      %v2327 = vunpack.c.0.s8 %v2326
      %v2328 = vlaneseq
      %v2329 = vshrl.u32 %v2328, 7
      %v2330 = vsub.s32 %v2327, %v2329
      %v2331 = vrot.slane %v2317, %v2330
      %v2332 = vcombine.low %v2324, %v2331
      %v2334 = vunpack.c.l.s4 1966171168
      %v2335 = vunpack.c.0.s8 %v2334
      %v2336 = vlaneseq
      %v2337 = vshrl.u32 %v2336, 7
      %v2338 = vsub.s32 %v2335, %v2337
      %v2339 = vrot.slane %v2332, %v2338
      %v2341 = vmax.f32 %v2311, %v2339
      %v2342 = vlaneseq
      %vm2343 = vcmp.ge.s32.totalorder %v2342, 0
      %vm2344 = vcmp.lt.s32.totalorder %v2342, 512
      %vm2345 = vmand %vm2343, %vm2344
      %2346 = vst.msk [vmem:[%s277] sm:$0xf] %vm2345, %v2341
      %p2347 = scmp.lt.s32.totalorder %s21, 1
      %s2348 = scalar_select %p2347, %s21, 1
      %s2349 = smul.addr %s2348, 4
      %s2350 = scalar_lea.vmem %s6, %s2349
      // Predicated region
      $region49: #{point_center_forward.1} parent=43 // pred_check
        %p2351 = pneg %p180
      $region50: #{point_center_forward.1} parent=43 // pred_check_branch
        %2353 = sbr.rel (%p2351) target = $region52
      $region51: #{point_center_forward.1} parent=43 // pred_region
        _
      $region52: #{point_center_forward.1} parent=43 // pred_fallthru
        _
    $region44: #{point_center_forward.1} parent=5 // pred_fallthru
      _
    %p2354 = scmp.le.s32.totalorder 2, %s12
    // Predicated region
    $region53: #{point_center_forward.1} parent=5 // pred_check
      %p2355 = pneg %p2354
    $region54: #{point_center_forward.1} parent=5 // pred_check_branch
      %2357 = sbr.rel (%p2355) target = $region56
    $region55: #{point_center_forward.1} parent=5 // pred_region
      %s2358 = ssub.s32 %s12, 2
      // Predicated region
      $region57: #{point_center_forward.1} parent=55 // pred_check
        %p2359 = pneg %p186
      $region58: #{point_center_forward.1} parent=55 // pred_check_branch
        %2361 = sbr.rel (%p2359) target = $region60
      $region59: #{point_center_forward.1} parent=55 // pred_region
        %p2362 = scmp.lt.s32.totalorder %s23, 1
        %s2363 = scalar_select %p2362, %s23, 1
        %s2364 = smul.addr %s2363, 4
        %s2365 = scalar_lea.vmem %s6, %s2364
      $region60: #{point_center_forward.1} parent=55 // pred_fallthru
        _
    $region56: #{point_center_forward.1} parent=5 // pred_fallthru
      _
  $region6: #{point_center_forward.1} parent=0 // loop_footer
    %s16 = sadd.s32 1, %s12
  $region7: #{point_center_forward.1} parent=0 // loop_footer_branch
    %11 = sbr.rel target = $region3
  $region8: #{point_center_forward.1} parent=0 // loop_exit
    _

</llo_original>
